<compile_context>
chip_gen: v7x
topology: tpu7x:2x2x1
jax: 0.10.0
libtpu: 0.0.40
codegen_flags: <defaults>
</compile_context>

<pallas_src>
import jax
import jax.numpy as jnp
from jax.experimental import pallas as pl
from jax.experimental.pallas import tpu as pltpu


def _round_up(x, m):
    return ((x + m - 1) // m) * m


def _critic_kernel(state_ref, action_ref, w1_ref, b1_ref, w2_ref, b2_ref,
                   w3t_ref, b3_ref, q_ref):
    H = w2_ref.shape[-1]

    # Lane concat of state/action (S+A = 24 fits in one vreg lane group), bf16 for MXU.
    sa_bf = jnp.concatenate([state_ref[...], action_ref[...]],
                            axis=-1).astype(jnp.bfloat16)                 # (TB, S+A)

    # Fused layer 1 for BOTH heads: one MXU launch instead of four tiny-K dots.
    h1_all = jnp.dot(sa_bf, w1_ref[...],
                     preferred_element_type=jnp.float32) + b1_ref[...]    # (TB, 2H) f32
    h1_all = jnp.maximum(h1_all, 0.0)

    for h in range(2):  # static unroll over the two Q heads
        h1 = h1_all[:, h * H:(h + 1) * H]                                 # 128-aligned lane slice
        h2 = jnp.dot(h1.astype(jnp.bfloat16), w2_ref[h],
                     preferred_element_type=jnp.float32) + b2_ref[h]      # (TB, H) f32
        h2 = jnp.maximum(h2, 0.0)
        # Layer 3: lane-dense VPU multiply + XLU reduce instead of a lane-sparse
        # (H, 1) MXU matvec.
        qh = jnp.sum(h2 * w3t_ref[h], axis=-1) + b3_ref[h]                # (TB,)
        q_ref[h, :] = qh                                                  # direct row store


def critic_forward(state, action, params, *, block_b=2048, min_tiles=1):
    """Returns (q1, q2), each of shape (B, 1) float32.

    min_tiles: set to 2 on v7x so the "parallel" batch axis produces at least two
    tiles and both TensorCores get work; 1 is optimal on single-TC v5e/v6e.
    """
    B, S = state.shape
    A = action.shape[1]
    w1, b1, w2, b2, w3t, b3 = params
    H = w2.shape[-1]

    # Batch tile: multiple of 128 (dense loads / lane-dense output store), at least
    # `min_tiles` tiles, capped at block_b ("fewer, larger tiles" on single-TC chips).
    Bp128 = _round_up(B, 128)
    TB = min(block_b, max(128, _round_up(pl.cdiv(Bp128, min_tiles), 128)))
    nb = pl.cdiv(Bp128, TB)
    Bp = nb * TB
    if Bp != B:  # pad batch; pad rows carry garbage after bias+ReLU but are sliced off
        pad = Bp - B
        state = jnp.pad(state, ((0, pad), (0, 0)))
        action = jnp.pad(action, ((0, pad), (0, 0)))

    # --- advisory cost estimate (2 heads, mul+add) ---
    flops = 4 * Bp * ((S + A) * H + H * H + H)
    bytes_accessed = sum(int(a.size) * a.dtype.itemsize
                         for a in (state, action, w1, b1, w2, b2, w3t, b3))
    bytes_accessed += 2 * Bp * 4  # output
    cost = pl.CostEstimate(flops=int(flops), transcendentals=0,
                           bytes_accessed=int(bytes_accessed))

    # --- VMEM estimate; only raise the scoped limit if a huge TB would blow past
    #     v5e's 16 MiB default (default sizes stay far below it). ---
    weight_bytes = sum(int(a.size) * a.dtype.itemsize
                       for a in (w1, b1, w2, b2, w3t, b3))
    act_bytes = TB * (2 * H) * 4 + TB * H * (4 + 2) + TB * (S + A) * (4 + 2)
    io_bytes = 2 * TB * (S + A) * 4 + 2 * 2 * TB * 4   # double-buffered inputs + out
    vmem_est = 2 * weight_bytes + act_bytes + io_bytes
    compiler_kwargs = dict(dimension_semantics=("parallel",))
    if vmem_est > 12 * 1024 * 1024:
        compiler_kwargs["vmem_limit_bytes"] = min(int(2 * vmem_est), 64 * 1024 * 1024)

    q = pl.pallas_call(
        _critic_kernel,
        out_shape=jax.ShapeDtypeStruct((2, Bp), jnp.float32),
        grid_spec=pltpu.PrefetchScalarGridSpec(
            num_scalar_prefetch=0,
            grid=(nb,),  # batch tiles; "parallel" -> can split across v7x's 2 TCs
            in_specs=[
                pl.BlockSpec((TB, S), lambda i: (i, 0)),            # state tile
                pl.BlockSpec((TB, A), lambda i: (i, 0)),            # action tile
                pl.BlockSpec((S + A, 2 * H), lambda i: (0, 0)),     # fused W1, bf16
                pl.BlockSpec((1, 2 * H), lambda i: (0, 0)),         # fused b1, f32
                pl.BlockSpec((2, H, H), lambda i: (0, 0, 0)),       # W2, bf16
                pl.BlockSpec((2, 1, H), lambda i: (0, 0, 0)),       # b2, f32
                pl.BlockSpec((2, 1, H), lambda i: (0, 0, 0)),       # W3^T, f32
                pl.BlockSpec((2, 1), lambda i: (0, 0)),             # b3, f32
            ],
            out_specs=pl.BlockSpec((2, TB), lambda i: (0, i)),      # lane-dense (batch last)
        ),
        compiler_params=pltpu.CompilerParams(**compiler_kwargs),
        cost_estimate=cost,
    )(state, action, w1, b1, w2, b2, w3t, b3)

    q1 = q[0, :B][:, None]
    q2 = q[1, :B][:, None]
    return q1, q2


def init_critic_params(key, state_dim, action_dim, h_size=256):
    """PyTorch nn.Linear-style init (uniform +-1/sqrt(fan_in)) for both Q heads,
    stored in the kernel-friendly layout (heads fused along N for layer 1,
    transposed W3, bf16 matmul weights)."""
    in_dim = state_dim + action_dim
    keys = jax.random.split(key, 6)

    def lin(kw, kb, fan_in, fan_out):
        bound = 1.0 / jnp.sqrt(jnp.float32(fan_in))
        w = jax.random.uniform(kw, (2, fan_in, fan_out), jnp.float32, -bound, bound)
        b = jax.random.uniform(kb, (2, 1, fan_out), jnp.float32, -bound, bound)
        return w, b

    w1, b1 = lin(keys[0], keys[1], in_dim, h_size)
    w2, b2 = lin(keys[2], keys[3], h_size, h_size)
    w3, b3 = lin(keys[4], keys[5], h_size, 1)

    w1f = jnp.concatenate([w1[0], w1[1]], axis=-1).astype(jnp.bfloat16)  # (S+A, 2H)
    b1f = jnp.concatenate([b1[0], b1[1]], axis=-1)                       # (1, 2H) f32
    w2b = w2.astype(jnp.bfloat16)                                        # (2, H, H)
    w3t = jnp.transpose(w3, (0, 2, 1))                                   # (2, 1, H) f32
    b3s = b3[:, 0, :]                                                    # (2, 1)   f32
    return (w1f, b1f, w2b, b2, w3t, b3s)


def _reference(state, action, params):
    """Pure-JAX reference: same bf16-quantized weights, f32 activations/matmuls."""
    w1, b1, w2, b2, w3t, b3 = params
    H = w2.shape[-1]
    sa = jnp.concatenate([state, action], axis=1)
    outs = []
    for h in range(2):
        x = sa @ w1[:, h * H:(h + 1) * H].astype(jnp.float32) + b1[:, h * H:(h + 1) * H]
        x = jnp.maximum(x, 0.0)
        x = jnp.maximum(x @ w2[h].astype(jnp.float32) + b2[h], 0.0)
        q = jnp.sum(x * w3t[h], axis=-1, keepdims=True) + b3[h]
        outs.append(q)
    return outs[0], outs[1]


if __name__ == "__main__":
    key = jax.random.PRNGKey(0)
    k_param, k_state, k_action = jax.random.split(key, 3)

    batch, state_dim, action_dim = 8, 16, 8
    state = jax.random.normal(k_state, (batch, state_dim), jnp.float32)
    action = jax.random.normal(k_action, (batch, action_dim), jnp.float32)

    params = init_critic_params(k_param, state_dim, action_dim, h_size=256)

    q1, q2 = jax.jit(critic_forward)(state, action, params)
    jax.block_until_ready((q1, q2))

    r1, r2 = _reference(state, action, params)
    assert q1.shape == (batch, 1) and q2.shape == (batch, 1)
    # bf16 matmul operands (weights AND activations) in-kernel vs. f32-activation
    # reference -> loosened tolerance.
    assert jnp.allclose(q1, r1, atol=2e-2, rtol=2e-2)
    assert jnp.allclose(q2, r2, atol=2e-2, rtol=2e-2)

    print("KERNEL_OK")
</pallas_src>

<mosaic_0001>
module attributes {stable_mosaic.version = 11 : i64} {
  func.func @_critic_kernel(%arg0: i32, %arg1: memref<128x16xf32, #tpu.memory_space<vmem>>, %arg2: memref<128x8xf32, #tpu.memory_space<vmem>>, %arg3: memref<24x512xbf16, #tpu.memory_space<vmem>>, %arg4: memref<1x512xf32, #tpu.memory_space<vmem>>, %arg5: memref<2x256x256xbf16, #tpu.memory_space<vmem>>, %arg6: memref<2x1x256xf32, #tpu.memory_space<vmem>>, %arg7: memref<2x1x256xf32, #tpu.memory_space<vmem>>, %arg8: memref<2x1xf32, #tpu.memory_space<vmem>>, %arg9: memref<2x128xf32, #tpu.memory_space<vmem>>) attributes {dimension_semantics = [#tpu.dimension_semantics<parallel>], iteration_bounds = array<i64: 1>, scalar_prefetch = 0 : i64, scratch_operands = 0 : i64, tpu.core_type = #tpu.core_type<tc>, window_params = [{transform_indices = @transform_0, window_bounds = array<i64: 128, 16>}, {transform_indices = @transform_1, window_bounds = array<i64: 128, 8>}, {pipeline_mode = #tpu.pipeline_mode<synchronous>, transform_indices = @transform_2, window_bounds = array<i64: 24, 512>}, {pipeline_mode = #tpu.pipeline_mode<synchronous>, transform_indices = @transform_3, window_bounds = array<i64: 1, 512>}, {pipeline_mode = #tpu.pipeline_mode<synchronous>, transform_indices = @transform_4, window_bounds = array<i64: 2, 256, 256>}, {pipeline_mode = #tpu.pipeline_mode<synchronous>, transform_indices = @transform_5, window_bounds = array<i64: 2, 1, 256>}, {pipeline_mode = #tpu.pipeline_mode<synchronous>, transform_indices = @transform_6, window_bounds = array<i64: 2, 1, 256>}, {pipeline_mode = #tpu.pipeline_mode<synchronous>, transform_indices = @transform_7, window_bounds = array<i64: 2, 1>}, {transform_indices = @transform_8, window_bounds = array<i64: 2, 128>}]} {
    %c0 = arith.constant 0 : index
    %c0_0 = arith.constant 0 : index
    %0 = vector.load %arg1[%c0, %c0_0] : memref<128x16xf32, #tpu.memory_space<vmem>>, vector<128x16xf32>
    %c0_1 = arith.constant 0 : index
    %c0_2 = arith.constant 0 : index
    %1 = vector.load %arg2[%c0_1, %c0_2] : memref<128x8xf32, #tpu.memory_space<vmem>>, vector<128x8xf32>
    %2 = tpu.concatenate %0, %1 in 1 : vector<128x16xf32>, vector<128x8xf32> -> vector<128x24xf32>
    %3 = arith.truncf %2 : vector<128x24xf32> to vector<128x24xbf16>
    %c0_3 = arith.constant 0 : index
    %c0_4 = arith.constant 0 : index
    %4 = vector.load %arg3[%c0_3, %c0_4] : memref<24x512xbf16, #tpu.memory_space<vmem>>, vector<24x512xbf16>
    %cst = arith.constant dense<0.000000e+00> : vector<128x512xf32>
    %5 = tpu.matmul %3, %4, %cst {dimension_numbers = #tpu.dot_dimension_numbers<[1], [0], [0], [1], [0, 0, 1, 1], [], []>} : vector<128x24xbf16>, vector<24x512xbf16>, vector<128x512xf32> -> vector<128x512xf32>
    %c0_5 = arith.constant 0 : index
    %c0_6 = arith.constant 0 : index
    %6 = vector.load %arg4[%c0_5, %c0_6] : memref<1x512xf32, #tpu.memory_space<vmem>>, vector<1x512xf32>
    %7 = vector.broadcast %6 : vector<1x512xf32> to vector<128x512xf32>
    %8 = arith.addf %5, %7 : vector<128x512xf32>
    %cst_7 = arith.constant 0.000000e+00 : f32
    %9 = vector.broadcast %cst_7 : f32 to vector<128x512xf32>
    %10 = arith.maximumf %8, %9 : vector<128x512xf32>
    %11 = vector.extract_strided_slice %10 {offsets = [0, 0], sizes = [128, 256], strides = [1, 1]} : vector<128x512xf32> to vector<128x256xf32>
    %12 = arith.truncf %11 : vector<128x256xf32> to vector<128x256xbf16>
    %c0_8 = arith.constant 0 : index
    %c0_9 = arith.constant 0 : index
    %c0_10 = arith.constant 0 : index
    %13 = vector.load %arg5[%c0_8, %c0_9, %c0_10] : memref<2x256x256xbf16, #tpu.memory_space<vmem>>, vector<1x256x256xbf16>
    %14 = vector.shape_cast %13 : vector<1x256x256xbf16> to vector<256x256xbf16>
    %cst_11 = arith.constant dense<0.000000e+00> : vector<128x256xf32>
    %15 = tpu.matmul %12, %14, %cst_11 {dimension_numbers = #tpu.dot_dimension_numbers<[1], [0], [0], [1], [0, 0, 1, 1], [], []>} : vector<128x256xbf16>, vector<256x256xbf16>, vector<128x256xf32> -> vector<128x256xf32>
    %c0_12 = arith.constant 0 : index
    %c0_13 = arith.constant 0 : index
    %c0_14 = arith.constant 0 : index
    %16 = vector.load %arg6[%c0_12, %c0_13, %c0_14] : memref<2x1x256xf32, #tpu.memory_space<vmem>>, vector<1x1x256xf32>
    %17 = vector.shape_cast %16 : vector<1x1x256xf32> to vector<1x256xf32>
    %18 = vector.broadcast %17 : vector<1x256xf32> to vector<128x256xf32>
    %19 = arith.addf %15, %18 : vector<128x256xf32>
    %cst_15 = arith.constant 0.000000e+00 : f32
    %20 = vector.broadcast %cst_15 : f32 to vector<128x256xf32>
    %21 = arith.maximumf %19, %20 : vector<128x256xf32>
    %c0_16 = arith.constant 0 : index
    %c0_17 = arith.constant 0 : index
    %c0_18 = arith.constant 0 : index
    %22 = vector.load %arg7[%c0_16, %c0_17, %c0_18] : memref<2x1x256xf32, #tpu.memory_space<vmem>>, vector<1x1x256xf32>
    %23 = vector.shape_cast %22 : vector<1x1x256xf32> to vector<1x256xf32>
    %24 = vector.broadcast %23 : vector<1x256xf32> to vector<128x256xf32>
    %25 = arith.mulf %21, %24 : vector<128x256xf32>
    %cst_19 = arith.constant dense<0.000000e+00> : vector<128xf32>
    %26 = vector.multi_reduction <add>, %25, %cst_19 [1] : vector<128x256xf32> to vector<128xf32>
    %c0_20 = arith.constant 0 : index
    %c0_21 = arith.constant 0 : index
    %27 = vector.load %arg8[%c0_20, %c0_21] : memref<2x1xf32, #tpu.memory_space<vmem>>, vector<1x1xf32>
    %28 = vector.shape_cast %27 : vector<1x1xf32> to vector<1xf32>
    %29 = vector.broadcast %28 : vector<1xf32> to vector<128xf32>
    %30 = arith.addf %26, %29 : vector<128xf32>
    %c0_22 = arith.constant 0 : index
    %c0_23 = arith.constant 0 : index
    %31 = vector.load %arg9[%c0_22, %c0_23] : memref<2x128xf32, #tpu.memory_space<vmem>>, vector<1x128xf32>
    %32 = vector.shape_cast %31 : vector<1x128xf32> to vector<128xf32>
    %33 = vector.shape_cast %30 : vector<128xf32> to vector<1x128xf32>
    tpu.vector_store %arg9[%c0_22, %c0_23], %33 {strides = array<i32>} : memref<2x128xf32, #tpu.memory_space<vmem>>, vector<1x128xf32>,
    %34 = vector.extract_strided_slice %10 {offsets = [0, 256], sizes = [128, 256], strides = [1, 1]} : vector<128x512xf32> to vector<128x256xf32>
    %35 = arith.truncf %34 : vector<128x256xf32> to vector<128x256xbf16>
    %c1 = arith.constant 1 : index
    %c0_24 = arith.constant 0 : index
    %c0_25 = arith.constant 0 : index
    %36 = vector.load %arg5[%c1, %c0_24, %c0_25] : memref<2x256x256xbf16, #tpu.memory_space<vmem>>, vector<1x256x256xbf16>
    %37 = vector.shape_cast %36 : vector<1x256x256xbf16> to vector<256x256xbf16>
    %cst_26 = arith.constant dense<0.000000e+00> : vector<128x256xf32>
    %38 = tpu.matmul %35, %37, %cst_26 {dimension_numbers = #tpu.dot_dimension_numbers<[1], [0], [0], [1], [0, 0, 1, 1], [], []>} : vector<128x256xbf16>, vector<256x256xbf16>, vector<128x256xf32> -> vector<128x256xf32>
    %c1_27 = arith.constant 1 : index
    %c0_28 = arith.constant 0 : index
    %c0_29 = arith.constant 0 : index
    %39 = vector.load %arg6[%c1_27, %c0_28, %c0_29] : memref<2x1x256xf32, #tpu.memory_space<vmem>>, vector<1x1x256xf32>
    %40 = vector.shape_cast %39 : vector<1x1x256xf32> to vector<1x256xf32>
    %41 = vector.broadcast %40 : vector<1x256xf32> to vector<128x256xf32>
    %42 = arith.addf %38, %41 : vector<128x256xf32>
    %cst_30 = arith.constant 0.000000e+00 : f32
    %43 = vector.broadcast %cst_30 : f32 to vector<128x256xf32>
    %44 = arith.maximumf %42, %43 : vector<128x256xf32>
    %c1_31 = arith.constant 1 : index
    %c0_32 = arith.constant 0 : index
    %c0_33 = arith.constant 0 : index
    %45 = vector.load %arg7[%c1_31, %c0_32, %c0_33] : memref<2x1x256xf32, #tpu.memory_space<vmem>>, vector<1x1x256xf32>
    %46 = vector.shape_cast %45 : vector<1x1x256xf32> to vector<1x256xf32>
    %47 = vector.broadcast %46 : vector<1x256xf32> to vector<128x256xf32>
    %48 = arith.mulf %44, %47 : vector<128x256xf32>
    %cst_34 = arith.constant dense<0.000000e+00> : vector<128xf32>
    %49 = vector.multi_reduction <add>, %48, %cst_34 [1] : vector<128x256xf32> to vector<128xf32>
    %c1_35 = arith.constant 1 : index
    %c0_36 = arith.constant 0 : index
    %50 = vector.load %arg8[%c1_35, %c0_36] : memref<2x1xf32, #tpu.memory_space<vmem>>, vector<1x1xf32>
    %51 = vector.shape_cast %50 : vector<1x1xf32> to vector<1xf32>
    %52 = vector.broadcast %51 : vector<1xf32> to vector<128xf32>
    %53 = arith.addf %49, %52 : vector<128xf32>
    %c1_37 = arith.constant 1 : index
    %c0_38 = arith.constant 0 : index
    %54 = vector.load %arg9[%c1_37, %c0_38] : memref<2x128xf32, #tpu.memory_space<vmem>>, vector<1x128xf32>
    %55 = vector.shape_cast %54 : vector<1x128xf32> to vector<128xf32>
    %56 = vector.shape_cast %53 : vector<128xf32> to vector<1x128xf32>
    tpu.vector_store %arg9[%c1_37, %c0_38], %56 {strides = array<i32>} : memref<2x128xf32, #tpu.memory_space<vmem>>, vector<1x128xf32>,
    return
  }
  func.func @transform_0(%arg0: i32) -> (i32, i32) {
    %c0_i32 = arith.constant 0 : i32
    %c0_i32_0 = arith.constant 0 : i32
    return %arg0, %c0_i32 : i32, i32
  }
  func.func @transform_1(%arg0: i32) -> (i32, i32) {
    %c0_i32 = arith.constant 0 : i32
    %c0_i32_0 = arith.constant 0 : i32
    return %arg0, %c0_i32 : i32, i32
  }
  func.func @transform_2(%arg0: i32) -> (i32, i32) {
    %c0_i32 = arith.constant 0 : i32
    %c0_i32_0 = arith.constant 0 : i32
    %c0_i32_1 = arith.constant 0 : i32
    return %c0_i32, %c0_i32_0 : i32, i32
  }
  func.func @transform_3(%arg0: i32) -> (i32, i32) {
    %c0_i32 = arith.constant 0 : i32
    %c0_i32_0 = arith.constant 0 : i32
    %c0_i32_1 = arith.constant 0 : i32
    return %c0_i32, %c0_i32_0 : i32, i32
  }
  func.func @transform_4(%arg0: i32) -> (i32, i32, i32) {
    %c0_i32 = arith.constant 0 : i32
    %c0_i32_0 = arith.constant 0 : i32
    %c0_i32_1 = arith.constant 0 : i32
    %c0_i32_2 = arith.constant 0 : i32
    return %c0_i32, %c0_i32_0, %c0_i32_1 : i32, i32, i32
  }
  func.func @transform_5(%arg0: i32) -> (i32, i32, i32) {
    %c0_i32 = arith.constant 0 : i32
    %c0_i32_0 = arith.constant 0 : i32
    %c0_i32_1 = arith.constant 0 : i32
    %c0_i32_2 = arith.constant 0 : i32
    return %c0_i32, %c0_i32_0, %c0_i32_1 : i32, i32, i32
  }
  func.func @transform_6(%arg0: i32) -> (i32, i32, i32) {
    %c0_i32 = arith.constant 0 : i32
    %c0_i32_0 = arith.constant 0 : i32
    %c0_i32_1 = arith.constant 0 : i32
    %c0_i32_2 = arith.constant 0 : i32
    return %c0_i32, %c0_i32_0, %c0_i32_1 : i32, i32, i32
  }
  func.func @transform_7(%arg0: i32) -> (i32, i32) {
    %c0_i32 = arith.constant 0 : i32
    %c0_i32_0 = arith.constant 0 : i32
    %c0_i32_1 = arith.constant 0 : i32
    return %c0_i32, %c0_i32_0 : i32, i32
  }
  func.func @transform_8(%arg0: i32) -> (i32, i32) {
    %c0_i32 = arith.constant 0 : i32
    %c0_i32_0 = arith.constant 0 : i32
    return %c0_i32, %arg0 : i32, i32
  }
}

</mosaic_0001>

<llo_original>
// kernel: critic_forward.1
$region0: #{critic_forward.1}
  #allocation0 [shape = 'u32[]', space=smem, size = 0x4, offset = 0x4, fixed_abs, tag = 'smem constant byte address 0x4 - core index']
  #allocation1 [shape = 'u32[144,128]{1,0:T(1,128)}', space=vmem, size = 0x12000, scoped, tag = 'internal scratch']
  %s0 = inlined_call_operand.vmem [shape: f32[128,16], index: 0, kind: input, shape index: {}]
  %s1 = inlined_call_operand.vmem [shape: f32[128,8], index: 1, kind: input, shape index: {}]
  %s2 = inlined_call_operand.vmem [shape: bf16[24,512], index: 2, kind: input, shape index: {}]
  %s3 = inlined_call_operand.vmem [shape: f32[1,512], index: 3, kind: input, shape index: {}]
  %s4 = inlined_call_operand.hbm [shape: bf16[2,256,256], index: 4, kind: input, shape index: {}]
  %s5 = inlined_call_operand.vmem [shape: f32[2,1,256], index: 5, kind: input, shape index: {}]
  %s6 = inlined_call_operand.vmem [shape: f32[2,1,256], index: 6, kind: input, shape index: {}]
  %s7 = inlined_call_operand.vmem [shape: f32[2,1], index: 7, kind: input, shape index: {}]
  %s8 = inlined_call_operand.vmem [shape: f32[2,128], index: 8, kind: output, shape index: {}]
  %s9 = sld [smem:[#allocation0]]
  $region46: #{critic_forward.1} parent=0
    _
  %s11 = ssub.s32 1, %s9
  %s12 = scalar_select 0, %s11, %s9
  $region1: #{critic_forward.1} parent=0
    #allocation2 [shape = 'u8[262144]{0}', space=vmem, size = 0x40000, scoped, tag = 'input window, operand 4, single buffered']
    #allocation3 [shape = 's32[1]{0}', space=sflag, size = 0x4, scoped, tag = 'scoped memory for critic_forward.1']
    %13 = vsyncpa [#allocation3], 0
    // Predicated region
    $region2: #{critic_forward.1} parent=1 // pred_check
      _
    $region3: #{critic_forward.1} parent=1 // pred_check_branch
      %15 = sbr.rel (0) target = $region5
    $region4: #{critic_forward.1} parent=1 // pred_region
      _
    $region5: #{critic_forward.1} parent=1 // pred_fallthru
      _
    // Predicated region
    $region6: #{critic_forward.1} parent=1 // pred_check
      _
    $region7: #{critic_forward.1} parent=1 // pred_check_branch
      %17 = sbr.rel (0) target = $region9
    $region8: #{critic_forward.1} parent=1 // pred_region
      _
    $region9: #{critic_forward.1} parent=1 // pred_fallthru
      _
    // Predicated region
    $region10: #{critic_forward.1} parent=1 // pred_check
      _
    $region11: #{critic_forward.1} parent=1 // pred_check_branch
      %19 = sbr.rel (0) target = $region13
    $region12: #{critic_forward.1} parent=1 // pred_region
      _
    $region13: #{critic_forward.1} parent=1 // pred_fallthru
      _
    // Predicated region
    $region14: #{critic_forward.1} parent=1 // pred_check
      _
    $region15: #{critic_forward.1} parent=1 // pred_check_branch
      %21 = sbr.rel (0) target = $region17
    $region16: #{critic_forward.1} parent=1 // pred_region
      _
    $region17: #{critic_forward.1} parent=1 // pred_fallthru
      _
    // Predicated region
    $region18: #{critic_forward.1} parent=1 // pred_check
      _
    $region19: #{critic_forward.1} parent=1 // pred_check_branch
      %23 = sbr.rel (0) target = $region21
    $region20: #{critic_forward.1} parent=1 // pred_region
      %s25 = ssub.s32 8192, 8192
      %26 = vsyncadd [#allocation3], %s25
      %s27 = sshll.u32 [#allocation2], 4
      %s28 = int_to_ptr.vmem [resolvable:$true] %s27
      %33 = dma.hbm_to_vmem [thread:$0]  %s4, 8192, %s28, [#allocation3], 128, 128, 8
    $region21: #{critic_forward.1} parent=1 // pred_fallthru
      _
    // Predicated region
    $region22: #{critic_forward.1} parent=1 // pred_check
      _
    $region23: #{critic_forward.1} parent=1 // pred_check_branch
      %35 = sbr.rel (0) target = $region25
    $region24: #{critic_forward.1} parent=1 // pred_region
      _
    $region25: #{critic_forward.1} parent=1 // pred_fallthru
      _
    // Predicated region
    $region26: #{critic_forward.1} parent=1 // pred_check
      _
    $region27: #{critic_forward.1} parent=1 // pred_check_branch
      %37 = sbr.rel (0) target = $region29
    $region28: #{critic_forward.1} parent=1 // pred_region
      _
    $region29: #{critic_forward.1} parent=1 // pred_fallthru
      _
    // Predicated region
    $region30: #{critic_forward.1} parent=1 // pred_check
      _
    $region31: #{critic_forward.1} parent=1 // pred_check_branch
      %39 = sbr.rel (0) target = $region33
    $region32: #{critic_forward.1} parent=1 // pred_region
      _
    $region33: #{critic_forward.1} parent=1 // pred_fallthru
      _
    // Predicated region
    $region34: #{critic_forward.1} parent=1 // pred_check
      _
    $region35: #{critic_forward.1} parent=1 // pred_check_branch
      %41 = sbr.rel (0) target = $region37
    $region36: #{critic_forward.1} parent=1 // pred_region
      %42 = dma.done [#allocation3], 8192
    $region37: #{critic_forward.1} parent=1 // pred_fallthru
      _
    %v44 = vld [vmem:[%s0] sm:$0xff]
    %v45 = vld [vmem:[%s0 + $0x8] sm:$0xff]
    %v46 = vld [vmem:[%s0 + $0x10] sm:$0xff]
    %v47 = vld [vmem:[%s0 + $0x18] sm:$0xff]
    %v48 = vld [vmem:[%s0 + $0x20] sm:$0xff]
    %v49 = vld [vmem:[%s0 + $0x28] sm:$0xff]
    %v50 = vld [vmem:[%s0 + $0x30] sm:$0xff]
    %v51 = vld [vmem:[%s0 + $0x38] sm:$0xff]
    %v52 = vld [vmem:[%s0 + $0x40] sm:$0xff]
    %v53 = vld [vmem:[%s0 + $0x48] sm:$0xff]
    %v54 = vld [vmem:[%s0 + $0x50] sm:$0xff]
    %v55 = vld [vmem:[%s0 + $0x58] sm:$0xff]
    %v56 = vld [vmem:[%s0 + $0x60] sm:$0xff]
    %v57 = vld [vmem:[%s0 + $0x68] sm:$0xff]
    %v58 = vld [vmem:[%s0 + $0x70] sm:$0xff]
    %v59 = vld [vmem:[%s0 + $0x78] sm:$0xff]
    %v60 = vld [vmem:[%s1] sm:$0xff]
    %v61 = vld [vmem:[%s1 + $0x8] sm:$0xff]
    %v62 = vld [vmem:[%s1 + $0x10] sm:$0xff]
    %v63 = vld [vmem:[%s1 + $0x18] sm:$0xff]
    %v64 = vld [vmem:[%s1 + $0x20] sm:$0xff]
    %v65 = vld [vmem:[%s1 + $0x28] sm:$0xff]
    %v66 = vld [vmem:[%s1 + $0x30] sm:$0xff]
    %v67 = vld [vmem:[%s1 + $0x38] sm:$0xff]
    %v68 = vld [vmem:[%s1 + $0x40] sm:$0xff]
    %v69 = vld [vmem:[%s1 + $0x48] sm:$0xff]
    %v70 = vld [vmem:[%s1 + $0x50] sm:$0xff]
    %v71 = vld [vmem:[%s1 + $0x58] sm:$0xff]
    %v72 = vld [vmem:[%s1 + $0x60] sm:$0xff]
    %v73 = vld [vmem:[%s1 + $0x68] sm:$0xff]
    %v74 = vld [vmem:[%s1 + $0x70] sm:$0xff]
    %v75 = vld [vmem:[%s1 + $0x78] sm:$0xff]
    %92 = vrot.lane.b32.xlu0 %v60, 16
    %v93 = vpop.permute.xlu0 %92
    %94 = vrot.lane.b32.xlu0 %v61, 16
    %v95 = vpop.permute.xlu0 %94
    %96 = vrot.lane.b32.xlu0 %v62, 16
    %v97 = vpop.permute.xlu0 %96
    %98 = vrot.lane.b32.xlu0 %v63, 16
    %v99 = vpop.permute.xlu0 %98
    %100 = vrot.lane.b32.xlu0 %v64, 16
    %v101 = vpop.permute.xlu0 %100
    %102 = vrot.lane.b32.xlu0 %v65, 16
    %v103 = vpop.permute.xlu0 %102
    %104 = vrot.lane.b32.xlu0 %v66, 16
    %v105 = vpop.permute.xlu0 %104
    %106 = vrot.lane.b32.xlu0 %v67, 16
    %v107 = vpop.permute.xlu0 %106
    %108 = vrot.lane.b32.xlu0 %v68, 16
    %v109 = vpop.permute.xlu0 %108
    %110 = vrot.lane.b32.xlu0 %v69, 16
    %v111 = vpop.permute.xlu0 %110
    %112 = vrot.lane.b32.xlu0 %v70, 16
    %v113 = vpop.permute.xlu0 %112
    %114 = vrot.lane.b32.xlu0 %v71, 16
    %v115 = vpop.permute.xlu0 %114
    %116 = vrot.lane.b32.xlu0 %v72, 16
    %v117 = vpop.permute.xlu0 %116
    %118 = vrot.lane.b32.xlu0 %v73, 16
    %v119 = vpop.permute.xlu0 %118
    %120 = vrot.lane.b32.xlu0 %v74, 16
    %v121 = vpop.permute.xlu0 %120
    %122 = vrot.lane.b32.xlu0 %v75, 16
    %v123 = vpop.permute.xlu0 %122
    %vm140 = vcmask 130048
    %v141 = vsel %vm140, %v44, %v93
    %v142 = vsel %vm140, %v45, %v95
    %v143 = vsel %vm140, %v46, %v97
    %v144 = vsel %vm140, %v47, %v99
    %v145 = vsel %vm140, %v48, %v101
    %v146 = vsel %vm140, %v49, %v103
    %v147 = vsel %vm140, %v50, %v105
    %v148 = vsel %vm140, %v51, %v107
    %v149 = vsel %vm140, %v52, %v109
    %v150 = vsel %vm140, %v53, %v111
    %v151 = vsel %vm140, %v54, %v113
    %v152 = vsel %vm140, %v55, %v115
    %v153 = vsel %vm140, %v56, %v117
    %v154 = vsel %vm140, %v57, %v119
    %v155 = vsel %vm140, %v58, %v121
    %v156 = vsel %vm140, %v59, %v123
    %v157 = vpack.c.bf16 %v142, %v141
    %v158 = vpack.c.bf16 %v144, %v143
    %v159 = vpack.c.bf16 %v146, %v145
    %v160 = vpack.c.bf16 %v148, %v147
    %v161 = vpack.c.bf16 %v150, %v149
    %v162 = vpack.c.bf16 %v152, %v151
    %v163 = vpack.c.bf16 %v154, %v153
    %v164 = vpack.c.bf16 %v156, %v155
    %v165 = vld [vmem:[%s2] sm:$0xff]
    %v166 = vld [vmem:[%s2 + $0x8] sm:$0xff]
    %v167 = vld [vmem:[%s2 + $0x10] sm:$0xff]
    %v168 = vld [vmem:[%s2 + $0x18] sm:$0xff]
    %v169 = vld [vmem:[%s2 + $0x20] sm:$0xff]
    %v170 = vld [vmem:[%s2 + $0x28] sm:$0xff]
    %v171 = vld [vmem:[%s3] sm:$0xf]
    %v173 = vlaneseq
    %v174 = vshrl.u32 %v173, 7
    %v175 = vsub.s32 0, %v174
    %v176 = vrot.slane %v171, %v175
    %v177 = vlaneseq
    %v178 = vshrl.u32 %v177, 7
    %v179 = vsub.s32 1, %v178
    %v180 = vrot.slane %v171, %v179
    %v181 = vlaneseq
    %v182 = vshrl.u32 %v181, 7
    %v183 = vsub.s32 2, %v182
    %v184 = vrot.slane %v171, %v183
    %v185 = vlaneseq
    %v186 = vshrl.u32 %v185, 7
    %v187 = vsub.s32 3, %v186
    %v188 = vrot.slane %v171, %v187
    %v199 = vunpack.c.l.b16 %v165
    %v200 = vunpack.c.h.b16 %v165
    %v201 = vunpack.c.l.b16 %v166
    %v202 = vunpack.c.h.b16 %v166
    %v203 = vunpack.c.l.b16 %v167
    %v204 = vunpack.c.h.b16 %v167
    %v205 = vunpack.c.l.b16 %v168
    %v206 = vunpack.c.h.b16 %v168
    %v207 = vunpack.c.l.b16 %v169
    %v208 = vunpack.c.h.b16 %v169
    %v209 = vunpack.c.l.b16 %v170
    %v210 = vunpack.c.h.b16 %v170
    %v211 = vpack.c.b16 %v203, %v199
    %v212 = vpack.c.b16 %v204, %v200
    %v213 = vpack.c.b16 %v205, %v201
    %v214 = vpack.c.b16 %v206, %v202
    %v215 = vpack.c.b16 %v207, %v207
    %v216 = vpack.c.b16 %v208, %v208
    %v217 = vpack.c.b16 %v209, %v209
    %v218 = vpack.c.b16 %v210, %v210
    %vm223 = vcmask 195584
    %v225 = vsel %vm223, %v157, 0
    %v228 = vsel %vm223, %v158, 0
    %v231 = vsel %vm223, %v159, 0
    %v234 = vsel %vm223, %v160, 0
    %v237 = vsel %vm223, %v161, 0
    %v240 = vsel %vm223, %v162, 0
    %v243 = vsel %vm223, %v163, 0
    %v246 = vsel %vm223, %v164, 0
    %vm248 = vcmask 1043456
    %v250 = vsel %vm248, %v215, 0
    %v253 = vsel %vm248, %v216, 0
    %v256 = vsel %vm248, %v217, 0
    %v259 = vsel %vm248, %v218, 0
    %261 = vmatprep.subr.bf16.mxu0 %v212
    %262 = vmatpush1.bf16.msra.mxu0 %v211
    %263 = vmatprep.subr.bf16.mxu0 %v253
    %264 = vmatpush1.bf16.msra.mxu0 %v250
    %265 = vmatprep.subr.bf16.mxu0 0
    %266 = vmatpush1.bf16.msra.mxu0 0
    %267 = vmatprep.subr.bf16.mxu0 0
    %268 = vmatpush1.bf16.msra.mxu0 0
    %269 = vmatprep.subr.bf16.mxu0 0
    %270 = vmatpush1.bf16.msra.mxu0 0
    %271 = vmatprep.subr.bf16.mxu0 0
    %272 = vmatpush1.bf16.msra.mxu0 0
    %273 = vmatprep.subr.bf16.mxu0 0
    %274 = vmatpush1.bf16.msra.mxu0 0
    %275 = vmatprep.subr.bf16.mxu0 0
    %276 = vmatpush1.bf16.msra.mxu0 0
    %277 = vmatprep.subr.bf16.mxu0 0
    %278 = vmatpush1.bf16.msra.mxu0 0
    %279 = vmatprep.subr.bf16.mxu0 0
    %280 = vmatpush1.bf16.msra.mxu0 0
    %281 = vmatprep.subr.bf16.mxu0 0
    %282 = vmatpush1.bf16.msra.mxu0 0
    %283 = vmatprep.subr.bf16.mxu0 0
    %284 = vmatpush1.bf16.msra.mxu0 0
    %285 = vmatprep.subr.bf16.mxu0 0
    %286 = vmatpush1.bf16.msra.mxu0 0
    %287 = vmatprep.subr.bf16.mxu0 0
    %288 = vmatpush1.bf16.msra.mxu0 0
    %289 = vmatprep.subr.bf16.mxu0 0
    %290 = vmatpush1.bf16.msra.mxu0 0
    %291 = vmatprep.subr.bf16.mxu0 0
    %292 = vmatpush1.bf16.msra.mxu0 0
    %293 = vmatprep.mubr.bf16.mxu0 0
    %294 = vmatmul.mubr.bf16.gmra.mrb[0].mxu0 %v225
    %v295 = vpop.f32.mrb[0].mxu0
    %v296 = vadd.f32 %v176, %v295
    %v297 = vpop.f32.mrb[0].mxu0
    %v298 = vadd.f32 %v180, %v297
    %v299 = vpop.f32.mrb[0].mxu0
    %v300 = vadd.f32 %v176, %v299
    %v301 = vpop.f32.mrb[0].mxu0
    %v302 = vadd.f32 %v180, %v301
    %303 = vmatprep.mubr.bf16.mxu0 0
    %304 = vmatmul.mubr.bf16.gmra.mrb[0].mxu0 %v228
    %v305 = vpop.f32.mrb[0].mxu0
    %v306 = vadd.f32 %v176, %v305
    %v307 = vpop.f32.mrb[0].mxu0
    %v308 = vadd.f32 %v180, %v307
    %v309 = vpop.f32.mrb[0].mxu0
    %v310 = vadd.f32 %v176, %v309
    %v311 = vpop.f32.mrb[0].mxu0
    %v312 = vadd.f32 %v180, %v311
    %313 = vmatprep.mubr.bf16.mxu0 0
    %314 = vmatmul.mubr.bf16.gmra.mrb[0].mxu0 %v231
    %v315 = vpop.f32.mrb[0].mxu0
    %v316 = vadd.f32 %v176, %v315
    %v317 = vpop.f32.mrb[0].mxu0
    %v318 = vadd.f32 %v180, %v317
    %v319 = vpop.f32.mrb[0].mxu0
    %v320 = vadd.f32 %v176, %v319
    %v321 = vpop.f32.mrb[0].mxu0
    %v322 = vadd.f32 %v180, %v321
    %323 = vmatprep.mubr.bf16.mxu0 0
    %324 = vmatmul.mubr.bf16.gmra.mrb[0].mxu0 %v234
    %v325 = vpop.f32.mrb[0].mxu0
    %v326 = vadd.f32 %v176, %v325
    %v327 = vpop.f32.mrb[0].mxu0
    %v328 = vadd.f32 %v180, %v327
    %v329 = vpop.f32.mrb[0].mxu0
    %v330 = vadd.f32 %v176, %v329
    %v331 = vpop.f32.mrb[0].mxu0
    %v332 = vadd.f32 %v180, %v331
    %333 = vmatprep.mubr.bf16.mxu0 0
    %334 = vmatmul.mubr.bf16.gmra.mrb[0].mxu0 %v237
    %v335 = vpop.f32.mrb[0].mxu0
    %v336 = vadd.f32 %v176, %v335
    %v337 = vpop.f32.mrb[0].mxu0
    %v338 = vadd.f32 %v180, %v337
    %v339 = vpop.f32.mrb[0].mxu0
    %v340 = vadd.f32 %v176, %v339
    %v341 = vpop.f32.mrb[0].mxu0
    %v342 = vadd.f32 %v180, %v341
    %343 = vmatprep.mubr.bf16.mxu0 0
    %344 = vmatmul.mubr.bf16.gmra.mrb[0].mxu0 %v240
    %v345 = vpop.f32.mrb[0].mxu0
    %v346 = vadd.f32 %v176, %v345
    %v347 = vpop.f32.mrb[0].mxu0
    %v348 = vadd.f32 %v180, %v347
    %v349 = vpop.f32.mrb[0].mxu0
    %v350 = vadd.f32 %v176, %v349
    %v351 = vpop.f32.mrb[0].mxu0
    %v352 = vadd.f32 %v180, %v351
    %353 = vmatprep.mubr.bf16.mxu0 0
    %354 = vmatmul.mubr.bf16.gmra.mrb[0].mxu0 %v243
    %v355 = vpop.f32.mrb[0].mxu0
    %v356 = vadd.f32 %v176, %v355
    %v357 = vpop.f32.mrb[0].mxu0
    %v358 = vadd.f32 %v180, %v357
    %v359 = vpop.f32.mrb[0].mxu0
    %v360 = vadd.f32 %v176, %v359
    %v361 = vpop.f32.mrb[0].mxu0
    %v362 = vadd.f32 %v180, %v361
    %363 = vmatprep.mubr.bf16.mxu0 0
    %364 = vmatmul.mubr.bf16.gmra.mrb[0].mxu0 %v246
    %v365 = vpop.f32.mrb[0].mxu0
    %v366 = vadd.f32 %v176, %v365
    %v367 = vpop.f32.mrb[0].mxu0
    %v368 = vadd.f32 %v180, %v367
    %v369 = vpop.f32.mrb[0].mxu0
    %v370 = vadd.f32 %v176, %v369
    %v371 = vpop.f32.mrb[0].mxu0
    %v372 = vadd.f32 %v180, %v371
    %373 = vdwg.mxu0
    %374 = vmatprep.subr.bf16.mxu0 %v214
    %375 = vmatpush1.bf16.msra.mxu0 %v213
    %376 = vmatprep.subr.bf16.mxu0 %v259
    %377 = vmatpush1.bf16.msra.mxu0 %v256
    %378 = vmatprep.subr.bf16.mxu0 0
    %379 = vmatpush1.bf16.msra.mxu0 0
    %380 = vmatprep.subr.bf16.mxu0 0
    %381 = vmatpush1.bf16.msra.mxu0 0
    %382 = vmatprep.subr.bf16.mxu0 0
    %383 = vmatpush1.bf16.msra.mxu0 0
    %384 = vmatprep.subr.bf16.mxu0 0
    %385 = vmatpush1.bf16.msra.mxu0 0
    %386 = vmatprep.subr.bf16.mxu0 0
    %387 = vmatpush1.bf16.msra.mxu0 0
    %388 = vmatprep.subr.bf16.mxu0 0
    %389 = vmatpush1.bf16.msra.mxu0 0
    %390 = vmatprep.subr.bf16.mxu0 0
    %391 = vmatpush1.bf16.msra.mxu0 0
    %392 = vmatprep.subr.bf16.mxu0 0
    %393 = vmatpush1.bf16.msra.mxu0 0
    %394 = vmatprep.subr.bf16.mxu0 0
    %395 = vmatpush1.bf16.msra.mxu0 0
    %396 = vmatprep.subr.bf16.mxu0 0
    %397 = vmatpush1.bf16.msra.mxu0 0
    %398 = vmatprep.subr.bf16.mxu0 0
    %399 = vmatpush1.bf16.msra.mxu0 0
    %400 = vmatprep.subr.bf16.mxu0 0
    %401 = vmatpush1.bf16.msra.mxu0 0
    %402 = vmatprep.subr.bf16.mxu0 0
    %403 = vmatpush1.bf16.msra.mxu0 0
    %404 = vmatprep.subr.bf16.mxu0 0
    %405 = vmatpush1.bf16.msra.mxu0 0
    %406 = vmatprep.mubr.bf16.mxu0 0
    %407 = vmatmul.mubr.bf16.gmra.mrb[0].mxu0 %v225
    %v408 = vpop.f32.mrb[0].mxu0
    %v409 = vadd.f32 %v184, %v408
    %v410 = vpop.f32.mrb[0].mxu0
    %v411 = vadd.f32 %v188, %v410
    %v412 = vpop.f32.mrb[0].mxu0
    %v413 = vadd.f32 %v184, %v412
    %v414 = vpop.f32.mrb[0].mxu0
    %v415 = vadd.f32 %v188, %v414
    %416 = vmatprep.mubr.bf16.mxu0 0
    %417 = vmatmul.mubr.bf16.gmra.mrb[0].mxu0 %v228
    %v418 = vpop.f32.mrb[0].mxu0
    %v419 = vadd.f32 %v184, %v418
    %v420 = vpop.f32.mrb[0].mxu0
    %v421 = vadd.f32 %v188, %v420
    %v422 = vpop.f32.mrb[0].mxu0
    %v423 = vadd.f32 %v184, %v422
    %v424 = vpop.f32.mrb[0].mxu0
    %v425 = vadd.f32 %v188, %v424
    %426 = vmatprep.mubr.bf16.mxu0 0
    %427 = vmatmul.mubr.bf16.gmra.mrb[0].mxu0 %v231
    %v428 = vpop.f32.mrb[0].mxu0
    %v429 = vadd.f32 %v184, %v428
    %v430 = vpop.f32.mrb[0].mxu0
    %v431 = vadd.f32 %v188, %v430
    %v432 = vpop.f32.mrb[0].mxu0
    %v433 = vadd.f32 %v184, %v432
    %v434 = vpop.f32.mrb[0].mxu0
    %v435 = vadd.f32 %v188, %v434
    %436 = vmatprep.mubr.bf16.mxu0 0
    %437 = vmatmul.mubr.bf16.gmra.mrb[0].mxu0 %v234
    %v438 = vpop.f32.mrb[0].mxu0
    %v439 = vadd.f32 %v184, %v438
    %v440 = vpop.f32.mrb[0].mxu0
    %v441 = vadd.f32 %v188, %v440
    %v442 = vpop.f32.mrb[0].mxu0
    %v443 = vadd.f32 %v184, %v442
    %v444 = vpop.f32.mrb[0].mxu0
    %v445 = vadd.f32 %v188, %v444
    %446 = vmatprep.mubr.bf16.mxu0 0
    %447 = vmatmul.mubr.bf16.gmra.mrb[0].mxu0 %v237
    %v448 = vpop.f32.mrb[0].mxu0
    %v449 = vadd.f32 %v184, %v448
    %v450 = vpop.f32.mrb[0].mxu0
    %v451 = vadd.f32 %v188, %v450
    %v452 = vpop.f32.mrb[0].mxu0
    %v453 = vadd.f32 %v184, %v452
    %v454 = vpop.f32.mrb[0].mxu0
    %v455 = vadd.f32 %v188, %v454
    %456 = vmatprep.mubr.bf16.mxu0 0
    %457 = vmatmul.mubr.bf16.gmra.mrb[0].mxu0 %v240
    %v458 = vpop.f32.mrb[0].mxu0
    %v459 = vadd.f32 %v184, %v458
    %v460 = vpop.f32.mrb[0].mxu0
    %v461 = vadd.f32 %v188, %v460
    %v462 = vpop.f32.mrb[0].mxu0
    %v463 = vadd.f32 %v184, %v462
    %v464 = vpop.f32.mrb[0].mxu0
    %v465 = vadd.f32 %v188, %v464
    %466 = vmatprep.mubr.bf16.mxu0 0
    %467 = vmatmul.mubr.bf16.gmra.mrb[0].mxu0 %v243
    %v468 = vpop.f32.mrb[0].mxu0
    %v469 = vadd.f32 %v184, %v468
    %v470 = vpop.f32.mrb[0].mxu0
    %v471 = vadd.f32 %v188, %v470
    %v472 = vpop.f32.mrb[0].mxu0
    %v473 = vadd.f32 %v184, %v472
    %v474 = vpop.f32.mrb[0].mxu0
    %v475 = vadd.f32 %v188, %v474
    %476 = vmatprep.mubr.bf16.mxu0 0
    %477 = vmatmul.mubr.bf16.gmra.mrb[0].mxu0 %v246
    %v478 = vpop.f32.mrb[0].mxu0
    %v479 = vadd.f32 %v184, %v478
    %v480 = vpop.f32.mrb[0].mxu0
    %v481 = vadd.f32 %v188, %v480
    %v482 = vpop.f32.mrb[0].mxu0
    %v483 = vadd.f32 %v184, %v482
    %v484 = vpop.f32.mrb[0].mxu0
    %v485 = vadd.f32 %v188, %v484
    %486 = vdwg.mxu0
    %v487 = vmax.f32 %v296, 0.0
    %v488 = vmax.f32 %v298, 0.0
    %v489 = vmax.f32 %v409, 0.0
    %v490 = vmax.f32 %v411, 0.0
    %v491 = vmax.f32 %v300, 0.0
    %v492 = vmax.f32 %v302, 0.0
    %v493 = vmax.f32 %v413, 0.0
    %v494 = vmax.f32 %v415, 0.0
    %v495 = vmax.f32 %v306, 0.0
    %v496 = vmax.f32 %v308, 0.0
    %v497 = vmax.f32 %v419, 0.0
    %v498 = vmax.f32 %v421, 0.0
    %v499 = vmax.f32 %v310, 0.0
    %v500 = vmax.f32 %v312, 0.0
    %v501 = vmax.f32 %v423, 0.0
    %v502 = vmax.f32 %v425, 0.0
    %v503 = vmax.f32 %v316, 0.0
    %v504 = vmax.f32 %v318, 0.0
    %v505 = vmax.f32 %v429, 0.0
    %v506 = vmax.f32 %v431, 0.0
    %v507 = vmax.f32 %v320, 0.0
    %v508 = vmax.f32 %v322, 0.0
    %v509 = vmax.f32 %v433, 0.0
    %v510 = vmax.f32 %v435, 0.0
    %v511 = vmax.f32 %v326, 0.0
    %v512 = vmax.f32 %v328, 0.0
    %v513 = vmax.f32 %v439, 0.0
    %v514 = vmax.f32 %v441, 0.0
    %v515 = vmax.f32 %v330, 0.0
    %v516 = vmax.f32 %v332, 0.0
    %v517 = vmax.f32 %v443, 0.0
    %v518 = vmax.f32 %v445, 0.0
    %v519 = vmax.f32 %v336, 0.0
    %v520 = vmax.f32 %v338, 0.0
    %v521 = vmax.f32 %v449, 0.0
    %v522 = vmax.f32 %v451, 0.0
    %v523 = vmax.f32 %v340, 0.0
    %v524 = vmax.f32 %v342, 0.0
    %v525 = vmax.f32 %v453, 0.0
    %v526 = vmax.f32 %v455, 0.0
    %v527 = vmax.f32 %v346, 0.0
    %v528 = vmax.f32 %v348, 0.0
    %v529 = vmax.f32 %v459, 0.0
    %v530 = vmax.f32 %v461, 0.0
    %v531 = vmax.f32 %v350, 0.0
    %v532 = vmax.f32 %v352, 0.0
    %v533 = vmax.f32 %v463, 0.0
    %v534 = vmax.f32 %v465, 0.0
    %v535 = vmax.f32 %v356, 0.0
    %v536 = vmax.f32 %v358, 0.0
    %v537 = vmax.f32 %v469, 0.0
    %v538 = vmax.f32 %v471, 0.0
    %v539 = vmax.f32 %v360, 0.0
    %v540 = vmax.f32 %v362, 0.0
    %v541 = vmax.f32 %v473, 0.0
    %v542 = vmax.f32 %v475, 0.0
    %v543 = vmax.f32 %v366, 0.0
    %v544 = vmax.f32 %v368, 0.0
    %v545 = vmax.f32 %v479, 0.0
    %v546 = vmax.f32 %v481, 0.0
    %v547 = vmax.f32 %v370, 0.0
    %v548 = vmax.f32 %v372, 0.0
    %v549 = vmax.f32 %v483, 0.0
    %v550 = vmax.f32 %v485, 0.0
    %v551 = vpack.c.bf16 %v491, %v487
    %v552 = vpack.c.bf16 %v492, %v488
    %v553 = vpack.c.bf16 %v499, %v495
    %v554 = vpack.c.bf16 %v500, %v496
    %v555 = vpack.c.bf16 %v507, %v503
    %v556 = vpack.c.bf16 %v508, %v504
    %v557 = vpack.c.bf16 %v515, %v511
    %v558 = vpack.c.bf16 %v516, %v512
    %v559 = vpack.c.bf16 %v523, %v519
    %v560 = vpack.c.bf16 %v524, %v520
    %v561 = vpack.c.bf16 %v531, %v527
    %v562 = vpack.c.bf16 %v532, %v528
    %v563 = vpack.c.bf16 %v539, %v535
    %v564 = vpack.c.bf16 %v540, %v536
    %v565 = vpack.c.bf16 %v547, %v543
    %v566 = vpack.c.bf16 %v548, %v544
    %v567 = vld [vmem:[#allocation2] sm:$0xff]
    %v568 = vld [vmem:[#allocation2 + $0x8] sm:$0xff]
    %v569 = vld [vmem:[#allocation2 + $0x10] sm:$0xff]
    %v570 = vld [vmem:[#allocation2 + $0x18] sm:$0xff]
    %v571 = vld [vmem:[#allocation2 + $0x20] sm:$0xff]
    %v572 = vld [vmem:[#allocation2 + $0x28] sm:$0xff]
    %v573 = vld [vmem:[#allocation2 + $0x30] sm:$0xff]
    %v574 = vld [vmem:[#allocation2 + $0x38] sm:$0xff]
    %v575 = vld [vmem:[#allocation2 + $0x40] sm:$0xff]
    %v576 = vld [vmem:[#allocation2 + $0x48] sm:$0xff]
    %v577 = vld [vmem:[#allocation2 + $0x50] sm:$0xff]
    %v578 = vld [vmem:[#allocation2 + $0x58] sm:$0xff]
    %v579 = vld [vmem:[#allocation2 + $0x60] sm:$0xff]
    %v580 = vld [vmem:[#allocation2 + $0x68] sm:$0xff]
    %v581 = vld [vmem:[#allocation2 + $0x70] sm:$0xff]
    %v582 = vld [vmem:[#allocation2 + $0x78] sm:$0xff]
    %v583 = vld [vmem:[#allocation2 + $0x80] sm:$0xff]
    %v584 = vld [vmem:[#allocation2 + $0x88] sm:$0xff]
    %v585 = vld [vmem:[#allocation2 + $0x90] sm:$0xff]
    %v586 = vld [vmem:[#allocation2 + $0x98] sm:$0xff]
    %v587 = vld [vmem:[#allocation2 + $0xa0] sm:$0xff]
    %v588 = vld [vmem:[#allocation2 + $0xa8] sm:$0xff]
    %v589 = vld [vmem:[#allocation2 + $0xb0] sm:$0xff]
    %v590 = vld [vmem:[#allocation2 + $0xb8] sm:$0xff]
    %v591 = vld [vmem:[#allocation2 + $0xc0] sm:$0xff]
    %v592 = vld [vmem:[#allocation2 + $0xc8] sm:$0xff]
    %v593 = vld [vmem:[#allocation2 + $0xd0] sm:$0xff]
    %v594 = vld [vmem:[#allocation2 + $0xd8] sm:$0xff]
    %v595 = vld [vmem:[#allocation2 + $0xe0] sm:$0xff]
    %v596 = vld [vmem:[#allocation2 + $0xe8] sm:$0xff]
    %v597 = vld [vmem:[#allocation2 + $0xf0] sm:$0xff]
    %v598 = vld [vmem:[#allocation2 + $0xf8] sm:$0xff]
    %v599 = vld [vmem:[%s5] sm:$0x3]
    %v601 = vlaneseq
    %v602 = vshrl.u32 %v601, 7
    %v603 = vsub.s32 0, %v602
    %v604 = vrot.slane %v599, %v603
    %v605 = vlaneseq
    %v606 = vshrl.u32 %v605, 7
    %v607 = vsub.s32 1, %v606
    %v608 = vrot.slane %v599, %v607
    %v643 = vunpack.c.l.b16 %v567
    %v644 = vunpack.c.h.b16 %v567
    %v645 = vunpack.c.l.b16 %v568
    %v646 = vunpack.c.h.b16 %v568
    %v647 = vunpack.c.l.b16 %v569
    %v648 = vunpack.c.h.b16 %v569
    %v649 = vunpack.c.l.b16 %v570
    %v650 = vunpack.c.h.b16 %v570
    %v651 = vunpack.c.l.b16 %v571
    %v652 = vunpack.c.h.b16 %v571
    %v653 = vunpack.c.l.b16 %v572
    %v654 = vunpack.c.h.b16 %v572
    %v655 = vunpack.c.l.b16 %v573
    %v656 = vunpack.c.h.b16 %v573
    %v657 = vunpack.c.l.b16 %v574
    %v658 = vunpack.c.h.b16 %v574
    %v659 = vunpack.c.l.b16 %v575
    %v660 = vunpack.c.h.b16 %v575
    %v661 = vunpack.c.l.b16 %v576
    %v662 = vunpack.c.h.b16 %v576
    %v663 = vunpack.c.l.b16 %v577
    %v664 = vunpack.c.h.b16 %v577
    %v665 = vunpack.c.l.b16 %v578
    %v666 = vunpack.c.h.b16 %v578
    %v667 = vunpack.c.l.b16 %v579
    %v668 = vunpack.c.h.b16 %v579
    %v669 = vunpack.c.l.b16 %v580
    %v670 = vunpack.c.h.b16 %v580
    %v671 = vunpack.c.l.b16 %v581
    %v672 = vunpack.c.h.b16 %v581
    %v673 = vunpack.c.l.b16 %v582
    %v674 = vunpack.c.h.b16 %v582
    %v675 = vunpack.c.l.b16 %v583
    %v676 = vunpack.c.h.b16 %v583
    %v677 = vunpack.c.l.b16 %v584
    %v678 = vunpack.c.h.b16 %v584
    %v679 = vunpack.c.l.b16 %v585
    %v680 = vunpack.c.h.b16 %v585
    %v681 = vunpack.c.l.b16 %v586
    %v682 = vunpack.c.h.b16 %v586
    %v683 = vunpack.c.l.b16 %v587
    %v684 = vunpack.c.h.b16 %v587
    %v685 = vunpack.c.l.b16 %v588
    %v686 = vunpack.c.h.b16 %v588
    %v687 = vunpack.c.l.b16 %v589
    %v688 = vunpack.c.h.b16 %v589
    %v689 = vunpack.c.l.b16 %v590
    %v690 = vunpack.c.h.b16 %v590
    %v691 = vunpack.c.l.b16 %v591
    %v692 = vunpack.c.h.b16 %v591
    %v693 = vunpack.c.l.b16 %v592
    %v694 = vunpack.c.h.b16 %v592
    %v695 = vunpack.c.l.b16 %v593
    %v696 = vunpack.c.h.b16 %v593
    %v697 = vunpack.c.l.b16 %v594
    %v698 = vunpack.c.h.b16 %v594
    %v699 = vunpack.c.l.b16 %v595
    %v700 = vunpack.c.h.b16 %v595
    %v701 = vunpack.c.l.b16 %v596
    %v702 = vunpack.c.h.b16 %v596
    %v703 = vunpack.c.l.b16 %v597
    %v704 = vunpack.c.h.b16 %v597
    %v705 = vunpack.c.l.b16 %v598
    %v706 = vunpack.c.h.b16 %v598
    %v707 = vpack.c.b16 %v645, %v643
    %v708 = vpack.c.b16 %v646, %v644
    %v709 = vpack.c.b16 %v649, %v647
    %v710 = vpack.c.b16 %v650, %v648
    %v711 = vpack.c.b16 %v653, %v651
    %v712 = vpack.c.b16 %v654, %v652
    %v713 = vpack.c.b16 %v657, %v655
    %v714 = vpack.c.b16 %v658, %v656
    %v715 = vpack.c.b16 %v661, %v659
    %v716 = vpack.c.b16 %v662, %v660
    %v717 = vpack.c.b16 %v665, %v663
    %v718 = vpack.c.b16 %v666, %v664
    %v719 = vpack.c.b16 %v669, %v667
    %v720 = vpack.c.b16 %v670, %v668
    %v721 = vpack.c.b16 %v673, %v671
    %v722 = vpack.c.b16 %v674, %v672
    %v723 = vpack.c.b16 %v677, %v675
    %v724 = vpack.c.b16 %v678, %v676
    %v725 = vpack.c.b16 %v681, %v679
    %v726 = vpack.c.b16 %v682, %v680
    %v727 = vpack.c.b16 %v685, %v683
    %v728 = vpack.c.b16 %v686, %v684
    %v729 = vpack.c.b16 %v689, %v687
    %v730 = vpack.c.b16 %v690, %v688
    %v731 = vpack.c.b16 %v693, %v691
    %v732 = vpack.c.b16 %v694, %v692
    %v733 = vpack.c.b16 %v697, %v695
    %v734 = vpack.c.b16 %v698, %v696
    %v735 = vpack.c.b16 %v701, %v699
    %v736 = vpack.c.b16 %v702, %v700
    %v737 = vpack.c.b16 %v705, %v703
    %v738 = vpack.c.b16 %v706, %v704
    %771 = vmatprep.subr.bf16.mxu0 %v708
    %772 = vmatpush1.bf16.msra.mxu0 %v707
    %773 = vmatprep.subr.bf16.mxu0 %v710
    %774 = vmatpush1.bf16.msra.mxu0 %v709
    %775 = vmatprep.subr.bf16.mxu0 %v712
    %776 = vmatpush1.bf16.msra.mxu0 %v711
    %777 = vmatprep.subr.bf16.mxu0 %v714
    %778 = vmatpush1.bf16.msra.mxu0 %v713
    %779 = vmatprep.subr.bf16.mxu0 %v716
    %780 = vmatpush1.bf16.msra.mxu0 %v715
    %781 = vmatprep.subr.bf16.mxu0 %v718
    %782 = vmatpush1.bf16.msra.mxu0 %v717
    %783 = vmatprep.subr.bf16.mxu0 %v720
    %784 = vmatpush1.bf16.msra.mxu0 %v719
    %785 = vmatprep.subr.bf16.mxu0 %v722
    %786 = vmatpush1.bf16.msra.mxu0 %v721
    %787 = vmatprep.subr.bf16.mxu0 %v724
    %788 = vmatpush1.bf16.msra.mxu0 %v723
    %789 = vmatprep.subr.bf16.mxu0 %v726
    %790 = vmatpush1.bf16.msra.mxu0 %v725
    %791 = vmatprep.subr.bf16.mxu0 %v728
    %792 = vmatpush1.bf16.msra.mxu0 %v727
    %793 = vmatprep.subr.bf16.mxu0 %v730
    %794 = vmatpush1.bf16.msra.mxu0 %v729
    %795 = vmatprep.subr.bf16.mxu0 %v732
    %796 = vmatpush1.bf16.msra.mxu0 %v731
    %797 = vmatprep.subr.bf16.mxu0 %v734
    %798 = vmatpush1.bf16.msra.mxu0 %v733
    %799 = vmatprep.subr.bf16.mxu0 %v736
    %800 = vmatpush1.bf16.msra.mxu0 %v735
    %801 = vmatprep.subr.bf16.mxu0 %v738
    %802 = vmatpush1.bf16.msra.mxu0 %v737
    %803 = vmatprep.mubr.bf16.mxu0 %v552
    %804 = vmatmul.mubr.bf16.gmra.mrb[0].mxu0 %v551
    %v805 = vpop.f32.mrb[0].mxu0
    %v806 = vadd.f32 %v604, %v805
    %v807 = vpop.f32.mrb[0].mxu0
    %v808 = vadd.f32 %v608, %v807
    %v809 = vpop.f32.mrb[0].mxu0
    %v810 = vadd.f32 %v604, %v809
    %v811 = vpop.f32.mrb[0].mxu0
    %v812 = vadd.f32 %v608, %v811
    %813 = vmatprep.mubr.bf16.mxu0 %v554
    %814 = vmatmul.mubr.bf16.gmra.mrb[0].mxu0 %v553
    %v815 = vpop.f32.mrb[0].mxu0
    %v816 = vadd.f32 %v604, %v815
    %v817 = vpop.f32.mrb[0].mxu0
    %v818 = vadd.f32 %v608, %v817
    %v819 = vpop.f32.mrb[0].mxu0
    %v820 = vadd.f32 %v604, %v819
    %v821 = vpop.f32.mrb[0].mxu0
    %v822 = vadd.f32 %v608, %v821
    %823 = vmatprep.mubr.bf16.mxu0 %v556
    %824 = vmatmul.mubr.bf16.gmra.mrb[0].mxu0 %v555
    %v825 = vpop.f32.mrb[0].mxu0
    %v826 = vadd.f32 %v604, %v825
    %v827 = vpop.f32.mrb[0].mxu0
    %v828 = vadd.f32 %v608, %v827
    %v829 = vpop.f32.mrb[0].mxu0
    %v830 = vadd.f32 %v604, %v829
    %v831 = vpop.f32.mrb[0].mxu0
    %v832 = vadd.f32 %v608, %v831
    %833 = vmatprep.mubr.bf16.mxu0 %v558
    %834 = vmatmul.mubr.bf16.gmra.mrb[0].mxu0 %v557
    %v835 = vpop.f32.mrb[0].mxu0
    %v836 = vadd.f32 %v604, %v835
    %v837 = vpop.f32.mrb[0].mxu0
    %v838 = vadd.f32 %v608, %v837
    %v839 = vpop.f32.mrb[0].mxu0
    %v840 = vadd.f32 %v604, %v839
    %v841 = vpop.f32.mrb[0].mxu0
    %v842 = vadd.f32 %v608, %v841
    %843 = vmatprep.mubr.bf16.mxu0 %v560
    %844 = vmatmul.mubr.bf16.gmra.mrb[0].mxu0 %v559
    %v845 = vpop.f32.mrb[0].mxu0
    %v846 = vadd.f32 %v604, %v845
    %v847 = vpop.f32.mrb[0].mxu0
    %v848 = vadd.f32 %v608, %v847
    %v849 = vpop.f32.mrb[0].mxu0
    %v850 = vadd.f32 %v604, %v849
    %v851 = vpop.f32.mrb[0].mxu0
    %v852 = vadd.f32 %v608, %v851
    %853 = vmatprep.mubr.bf16.mxu0 %v562
    %854 = vmatmul.mubr.bf16.gmra.mrb[0].mxu0 %v561
    %v855 = vpop.f32.mrb[0].mxu0
    %v856 = vadd.f32 %v604, %v855
    %v857 = vpop.f32.mrb[0].mxu0
    %v858 = vadd.f32 %v608, %v857
    %v859 = vpop.f32.mrb[0].mxu0
    %v860 = vadd.f32 %v604, %v859
    %v861 = vpop.f32.mrb[0].mxu0
    %v862 = vadd.f32 %v608, %v861
    %863 = vmatprep.mubr.bf16.mxu0 %v564
    %864 = vmatmul.mubr.bf16.gmra.mrb[0].mxu0 %v563
    %v865 = vpop.f32.mrb[0].mxu0
    %v866 = vadd.f32 %v604, %v865
    %v867 = vpop.f32.mrb[0].mxu0
    %v868 = vadd.f32 %v608, %v867
    %v869 = vpop.f32.mrb[0].mxu0
    %v870 = vadd.f32 %v604, %v869
    %v871 = vpop.f32.mrb[0].mxu0
    %v872 = vadd.f32 %v608, %v871
    %873 = vmatprep.mubr.bf16.mxu0 %v566
    %874 = vmatmul.mubr.bf16.gmra.mrb[0].mxu0 %v565
    %v875 = vpop.f32.mrb[0].mxu0
    %v876 = vadd.f32 %v604, %v875
    %v877 = vpop.f32.mrb[0].mxu0
    %v878 = vadd.f32 %v608, %v877
    %v879 = vpop.f32.mrb[0].mxu0
    %v880 = vadd.f32 %v604, %v879
    %v881 = vpop.f32.mrb[0].mxu0
    %v882 = vadd.f32 %v608, %v881
    %883 = vdwg.mxu0
    %v884 = vmax.f32 %v806, 0.0
    %v885 = vmax.f32 %v808, 0.0
    %v886 = vmax.f32 %v810, 0.0
    %v887 = vmax.f32 %v812, 0.0
    %v888 = vmax.f32 %v816, 0.0
    %v889 = vmax.f32 %v818, 0.0
    %v890 = vmax.f32 %v820, 0.0
    %v891 = vmax.f32 %v822, 0.0
    %v892 = vmax.f32 %v826, 0.0
    %v893 = vmax.f32 %v828, 0.0
    %v894 = vmax.f32 %v830, 0.0
    %v895 = vmax.f32 %v832, 0.0
    %v896 = vmax.f32 %v836, 0.0
    %v897 = vmax.f32 %v838, 0.0
    %v898 = vmax.f32 %v840, 0.0
    %v899 = vmax.f32 %v842, 0.0
    %v900 = vmax.f32 %v846, 0.0
    %v901 = vmax.f32 %v848, 0.0
    %v902 = vmax.f32 %v850, 0.0
    %v903 = vmax.f32 %v852, 0.0
    %v904 = vmax.f32 %v856, 0.0
    %v905 = vmax.f32 %v858, 0.0
    %v906 = vmax.f32 %v860, 0.0
    %v907 = vmax.f32 %v862, 0.0
    %v908 = vmax.f32 %v866, 0.0
    %v909 = vmax.f32 %v868, 0.0
    %v910 = vmax.f32 %v870, 0.0
    %v911 = vmax.f32 %v872, 0.0
    %v912 = vmax.f32 %v876, 0.0
    %v913 = vmax.f32 %v878, 0.0
    %v914 = vmax.f32 %v880, 0.0
    %v915 = vmax.f32 %v882, 0.0
    %v916 = vld [vmem:[%s6] sm:$0x3]
    %v918 = vlaneseq
    %v919 = vshrl.u32 %v918, 7
    %v920 = vsub.s32 0, %v919
    %v921 = vrot.slane %v916, %v920
    %v922 = vlaneseq
    %v923 = vshrl.u32 %v922, 7
    %v924 = vsub.s32 1, %v923
    %v925 = vrot.slane %v916, %v924
    %v928 = vmul.f32 %v884, %v921
    %v929 = vmul.f32 %v885, %v925
    %v930 = vmul.f32 %v886, %v921
    %v931 = vmul.f32 %v887, %v925
    %v932 = vmul.f32 %v888, %v921
    %v933 = vmul.f32 %v889, %v925
    %v934 = vmul.f32 %v890, %v921
    %v935 = vmul.f32 %v891, %v925
    %v936 = vmul.f32 %v892, %v921
    %v937 = vmul.f32 %v893, %v925
    %v938 = vmul.f32 %v894, %v921
    %v939 = vmul.f32 %v895, %v925
    %v940 = vmul.f32 %v896, %v921
    %v941 = vmul.f32 %v897, %v925
    %v942 = vmul.f32 %v898, %v921
    %v943 = vmul.f32 %v899, %v925
    %v944 = vmul.f32 %v900, %v921
    %v945 = vmul.f32 %v901, %v925
    %v946 = vmul.f32 %v902, %v921
    %v947 = vmul.f32 %v903, %v925
    %v948 = vmul.f32 %v904, %v921
    %v949 = vmul.f32 %v905, %v925
    %v950 = vmul.f32 %v906, %v921
    %v951 = vmul.f32 %v907, %v925
    %v952 = vmul.f32 %v908, %v921
    %v953 = vmul.f32 %v909, %v925
    %v954 = vmul.f32 %v910, %v921
    %v955 = vmul.f32 %v911, %v925
    %v956 = vmul.f32 %v912, %v921
    %v957 = vmul.f32 %v913, %v925
    %v958 = vmul.f32 %v914, %v921
    %v959 = vmul.f32 %v915, %v925
    %v960 = vadd.f32 %v928, %v929
    %961 = vadd.xlane.f32.xlu0 %v960
    %v962 = vpop.xlane.xlu0 %961
    %v963 = vadd.f32 %v930, %v931
    %964 = vadd.xlane.f32.xlu0 %v963
    %v965 = vpop.xlane.xlu0 %964
    %v966 = vadd.f32 %v932, %v933
    %967 = vadd.xlane.f32.xlu0 %v966
    %v968 = vpop.xlane.xlu0 %967
    %v969 = vadd.f32 %v934, %v935
    %970 = vadd.xlane.f32.xlu0 %v969
    %v971 = vpop.xlane.xlu0 %970
    %v972 = vadd.f32 %v936, %v937
    %973 = vadd.xlane.f32.xlu0 %v972
    %v974 = vpop.xlane.xlu0 %973
    %v975 = vadd.f32 %v938, %v939
    %976 = vadd.xlane.f32.xlu0 %v975
    %v977 = vpop.xlane.xlu0 %976
    %v978 = vadd.f32 %v940, %v941
    %979 = vadd.xlane.f32.xlu0 %v978
    %v980 = vpop.xlane.xlu0 %979
    %v981 = vadd.f32 %v942, %v943
    %982 = vadd.xlane.f32.xlu0 %v981
    %v983 = vpop.xlane.xlu0 %982
    %v984 = vadd.f32 %v944, %v945
    %985 = vadd.xlane.f32.xlu0 %v984
    %v986 = vpop.xlane.xlu0 %985
    %v987 = vadd.f32 %v946, %v947
    %988 = vadd.xlane.f32.xlu0 %v987
    %v989 = vpop.xlane.xlu0 %988
    %v990 = vadd.f32 %v948, %v949
    %991 = vadd.xlane.f32.xlu0 %v990
    %v992 = vpop.xlane.xlu0 %991
    %v993 = vadd.f32 %v950, %v951
    %994 = vadd.xlane.f32.xlu0 %v993
    %v995 = vpop.xlane.xlu0 %994
    %v996 = vadd.f32 %v952, %v953
    %997 = vadd.xlane.f32.xlu0 %v996
    %v998 = vpop.xlane.xlu0 %997
    %v999 = vadd.f32 %v954, %v955
    %1000 = vadd.xlane.f32.xlu0 %v999
    %v1001 = vpop.xlane.xlu0 %1000
    %v1002 = vadd.f32 %v956, %v957
    %1003 = vadd.xlane.f32.xlu0 %v1002
    %v1004 = vpop.xlane.xlu0 %1003
    %v1005 = vadd.f32 %v958, %v959
    %1006 = vadd.xlane.f32.xlu0 %v1005
    %v1007 = vpop.xlane.xlu0 %1006
    %v1008 = vld [vmem:[%s7] sm:$0x1]
    %1010 = vset.pattern.permute.xlu0 0
    %1011 = vperm.xlu0 %1010, %v1008
    %v1012 = vpop.permute.xlu0 %1011
    %v1013 = vlaneseq
    %v1014 = vshrl.u32 %v1013, 7
    %v1015 = vsub.s32 0, %v1014
    %v1016 = vrot.slane %v1012, %v1015
    %v1018 = vadd.f32 %v962, %v1016
    %v1019 = vadd.f32 %v965, %v1016
    %v1020 = vadd.f32 %v968, %v1016
    %v1021 = vadd.f32 %v971, %v1016
    %v1022 = vadd.f32 %v974, %v1016
    %v1023 = vadd.f32 %v977, %v1016
    %v1024 = vadd.f32 %v980, %v1016
    %v1025 = vadd.f32 %v983, %v1016
    %v1026 = vadd.f32 %v986, %v1016
    %v1027 = vadd.f32 %v989, %v1016
    %v1028 = vadd.f32 %v992, %v1016
    %v1029 = vadd.f32 %v995, %v1016
    %v1030 = vadd.f32 %v998, %v1016
    %v1031 = vadd.f32 %v1001, %v1016
    %v1032 = vadd.f32 %v1004, %v1016
    %v1033 = vadd.f32 %v1007, %v1016
    %1050 = vset.pattern.permute.xlu0 0
    %1051 = vperm.xlu0 %1050, %v1018
    %v1052 = vpop.permute.xlu0 %1051
    %1053 = vset.pattern.permute.xlu0 0
    %1054 = vperm.xlu0 %1053, %v1019
    %v1055 = vpop.permute.xlu0 %1054
    %1056 = vset.pattern.permute.xlu0 0
    %1057 = vperm.xlu0 %1056, %v1020
    %v1058 = vpop.permute.xlu0 %1057
    %1059 = vset.pattern.permute.xlu0 0
    %1060 = vperm.xlu0 %1059, %v1021
    %v1061 = vpop.permute.xlu0 %1060
    %1062 = vset.pattern.permute.xlu0 0
    %1063 = vperm.xlu0 %1062, %v1022
    %v1064 = vpop.permute.xlu0 %1063
    %1065 = vset.pattern.permute.xlu0 0
    %1066 = vperm.xlu0 %1065, %v1023
    %v1067 = vpop.permute.xlu0 %1066
    %1068 = vset.pattern.permute.xlu0 0
    %1069 = vperm.xlu0 %1068, %v1024
    %v1070 = vpop.permute.xlu0 %1069
    %1071 = vset.pattern.permute.xlu0 0
    %1072 = vperm.xlu0 %1071, %v1025
    %v1073 = vpop.permute.xlu0 %1072
    %1074 = vset.pattern.permute.xlu0 0
    %1075 = vperm.xlu0 %1074, %v1026
    %v1076 = vpop.permute.xlu0 %1075
    %1077 = vset.pattern.permute.xlu0 0
    %1078 = vperm.xlu0 %1077, %v1027
    %v1079 = vpop.permute.xlu0 %1078
    %1080 = vset.pattern.permute.xlu0 0
    %1081 = vperm.xlu0 %1080, %v1028
    %v1082 = vpop.permute.xlu0 %1081
    %1083 = vset.pattern.permute.xlu0 0
    %1084 = vperm.xlu0 %1083, %v1029
    %v1085 = vpop.permute.xlu0 %1084
    %1086 = vset.pattern.permute.xlu0 0
    %1087 = vperm.xlu0 %1086, %v1030
    %v1088 = vpop.permute.xlu0 %1087
    %1089 = vset.pattern.permute.xlu0 0
    %1090 = vperm.xlu0 %1089, %v1031
    %v1091 = vpop.permute.xlu0 %1090
    %1092 = vset.pattern.permute.xlu0 0
    %1093 = vperm.xlu0 %1092, %v1032
    %v1094 = vpop.permute.xlu0 %1093
    %1095 = vset.pattern.permute.xlu0 0
    %1096 = vperm.xlu0 %1095, %v1033
    %v1097 = vpop.permute.xlu0 %1096
    %v1098 = vlaneseq
    %v1099 = vand.u32 %v1098, 127
    %v1100 = vlaneseq
    %v1101 = vshrl.u32 %v1100, 7
    %v1102 = vsub.s32 %v1099, %v1101
    %v1103 = vrot.slane %v1052, %v1102
    %v1104 = vadd.s32 %v1099, 4294967288
    %v1105 = vlaneseq
    %v1106 = vshrl.u32 %v1105, 7
    %v1107 = vsub.s32 %v1104, %v1106
    %v1108 = vrot.slane %v1055, %v1107
    %vm1109 = vcmask 130112
    %v1110 = vsel %vm1109, %v1108, %v1103
    %v1111 = vadd.s32 %v1099, 4294967280
    %v1112 = vlaneseq
    %v1113 = vshrl.u32 %v1112, 7
    %v1114 = vsub.s32 %v1111, %v1113
    %v1115 = vrot.slane %v1058, %v1114
    %vm1116 = vcmask 195712
    %v1117 = vsel %vm1116, %v1115, %v1110
    %v1118 = vadd.s32 %v1099, 4294967272
    %v1119 = vlaneseq
    %v1120 = vshrl.u32 %v1119, 7
    %v1121 = vsub.s32 %v1118, %v1120
    %v1122 = vrot.slane %v1061, %v1121
    %vm1123 = vcmask 261312
    %v1124 = vsel %vm1123, %v1122, %v1117
    %v1125 = vadd.s32 %v1099, 4294967264
    %v1126 = vlaneseq
    %v1127 = vshrl.u32 %v1126, 7
    %v1128 = vsub.s32 %v1125, %v1127
    %v1129 = vrot.slane %v1064, %v1128
    %vm1130 = vcmask 326912
    %v1131 = vsel %vm1130, %v1129, %v1124
    %v1132 = vadd.s32 %v1099, 4294967256
    %v1133 = vlaneseq
    %v1134 = vshrl.u32 %v1133, 7
    %v1135 = vsub.s32 %v1132, %v1134
    %v1136 = vrot.slane %v1067, %v1135
    %vm1137 = vcmask 392512
    %v1138 = vsel %vm1137, %v1136, %v1131
    %v1139 = vadd.s32 %v1099, 4294967248
    %v1140 = vlaneseq
    %v1141 = vshrl.u32 %v1140, 7
    %v1142 = vsub.s32 %v1139, %v1141
    %v1143 = vrot.slane %v1070, %v1142
    %vm1144 = vcmask 458112
    %v1145 = vsel %vm1144, %v1143, %v1138
    %v1146 = vadd.s32 %v1099, 4294967240
    %v1147 = vlaneseq
    %v1148 = vshrl.u32 %v1147, 7
    %v1149 = vsub.s32 %v1146, %v1148
    %v1150 = vrot.slane %v1073, %v1149
    %vm1151 = vcmask 523712
    %v1152 = vsel %vm1151, %v1150, %v1145
    %v1153 = vadd.s32 %v1099, 4294967232
    %v1154 = vlaneseq
    %v1155 = vshrl.u32 %v1154, 7
    %v1156 = vsub.s32 %v1153, %v1155
    %v1157 = vrot.slane %v1076, %v1156
    %vm1158 = vcmask 589312
    %v1159 = vsel %vm1158, %v1157, %v1152
    %v1160 = vadd.s32 %v1099, 4294967224
    %v1161 = vlaneseq
    %v1162 = vshrl.u32 %v1161, 7
    %v1163 = vsub.s32 %v1160, %v1162
    %v1164 = vrot.slane %v1079, %v1163
    %vm1165 = vcmask 654912
    %v1166 = vsel %vm1165, %v1164, %v1159
    %v1167 = vadd.s32 %v1099, 4294967216
    %v1168 = vlaneseq
    %v1169 = vshrl.u32 %v1168, 7
    %v1170 = vsub.s32 %v1167, %v1169
    %v1171 = vrot.slane %v1082, %v1170
    %vm1172 = vcmask 720512
    %v1173 = vsel %vm1172, %v1171, %v1166
    %v1174 = vadd.s32 %v1099, 4294967208
    %v1175 = vlaneseq
    %v1176 = vshrl.u32 %v1175, 7
    %v1177 = vsub.s32 %v1174, %v1176
    %v1178 = vrot.slane %v1085, %v1177
    %vm1179 = vcmask 786112
    %v1180 = vsel %vm1179, %v1178, %v1173
    %v1181 = vadd.s32 %v1099, 4294967200
    %v1182 = vlaneseq
    %v1183 = vshrl.u32 %v1182, 7
    %v1184 = vsub.s32 %v1181, %v1183
    %v1185 = vrot.slane %v1088, %v1184
    %vm1186 = vcmask 851712
    %v1187 = vsel %vm1186, %v1185, %v1180
    %v1188 = vadd.s32 %v1099, 4294967192
    %v1189 = vlaneseq
    %v1190 = vshrl.u32 %v1189, 7
    %v1191 = vsub.s32 %v1188, %v1190
    %v1192 = vrot.slane %v1091, %v1191
    %vm1193 = vcmask 917312
    %v1194 = vsel %vm1193, %v1192, %v1187
    %v1195 = vadd.s32 %v1099, 4294967184
    %v1196 = vlaneseq
    %v1197 = vshrl.u32 %v1196, 7
    %v1198 = vsub.s32 %v1195, %v1197
    %v1199 = vrot.slane %v1094, %v1198
    %vm1200 = vcmask 982912
    %v1201 = vsel %vm1200, %v1199, %v1194
    %v1202 = vadd.s32 %v1099, 4294967176
    %v1203 = vlaneseq
    %v1204 = vshrl.u32 %v1203, 7
    %v1205 = vsub.s32 %v1202, %v1204
    %v1206 = vrot.slane %v1097, %v1205
    %vm1207 = vcmask 1048512
    %v1208 = vsel %vm1207, %v1206, %v1201
    %1210 = vst [vmem:[%s8] sm:$0x1] %v1208
    %v1211 = vpack.c.bf16 %v493, %v489
    %v1212 = vpack.c.bf16 %v494, %v490
    %v1213 = vpack.c.bf16 %v501, %v497
    %v1214 = vpack.c.bf16 %v502, %v498
    %v1215 = vpack.c.bf16 %v509, %v505
    %v1216 = vpack.c.bf16 %v510, %v506
    %v1217 = vpack.c.bf16 %v517, %v513
    %v1218 = vpack.c.bf16 %v518, %v514
    %v1219 = vpack.c.bf16 %v525, %v521
    %v1220 = vpack.c.bf16 %v526, %v522
    %v1221 = vpack.c.bf16 %v533, %v529
    %v1222 = vpack.c.bf16 %v534, %v530
    %v1223 = vpack.c.bf16 %v541, %v537
    %v1224 = vpack.c.bf16 %v542, %v538
    %v1225 = vpack.c.bf16 %v549, %v545
    %v1226 = vpack.c.bf16 %v550, %v546
    %s1227 = scalar_lea.vmem [#allocation2], 256
    %v1228 = vld [vmem:[%s1227] sm:$0xff]
    %v1229 = vld [vmem:[%s1227 + $0x8] sm:$0xff]
    %v1230 = vld [vmem:[%s1227 + $0x10] sm:$0xff]
    %v1231 = vld [vmem:[%s1227 + $0x18] sm:$0xff]
    %v1232 = vld [vmem:[%s1227 + $0x20] sm:$0xff]
    %v1233 = vld [vmem:[%s1227 + $0x28] sm:$0xff]
    %v1234 = vld [vmem:[%s1227 + $0x30] sm:$0xff]
    %v1235 = vld [vmem:[%s1227 + $0x38] sm:$0xff]
    %v1236 = vld [vmem:[%s1227 + $0x40] sm:$0xff]
    %v1237 = vld [vmem:[%s1227 + $0x48] sm:$0xff]
    %v1238 = vld [vmem:[%s1227 + $0x50] sm:$0xff]
    %v1239 = vld [vmem:[%s1227 + $0x58] sm:$0xff]
    %v1240 = vld [vmem:[%s1227 + $0x60] sm:$0xff]
    %v1241 = vld [vmem:[%s1227 + $0x68] sm:$0xff]
    %v1242 = vld [vmem:[%s1227 + $0x70] sm:$0xff]
    %v1243 = vld [vmem:[%s1227 + $0x78] sm:$0xff]
    %v1244 = vld [vmem:[%s1227 + $0x80] sm:$0xff]
    %v1245 = vld [vmem:[%s1227 + $0x88] sm:$0xff]
    %v1246 = vld [vmem:[%s1227 + $0x90] sm:$0xff]
    %v1247 = vld [vmem:[%s1227 + $0x98] sm:$0xff]
    %v1248 = vld [vmem:[%s1227 + $0xa0] sm:$0xff]
    %v1249 = vld [vmem:[%s1227 + $0xa8] sm:$0xff]
    %v1250 = vld [vmem:[%s1227 + $0xb0] sm:$0xff]
    %v1251 = vld [vmem:[%s1227 + $0xb8] sm:$0xff]
    %v1252 = vld [vmem:[%s1227 + $0xc0] sm:$0xff]
    %v1253 = vld [vmem:[%s1227 + $0xc8] sm:$0xff]
    %v1254 = vld [vmem:[%s1227 + $0xd0] sm:$0xff]
    %v1255 = vld [vmem:[%s1227 + $0xd8] sm:$0xff]
    %v1256 = vld [vmem:[%s1227 + $0xe0] sm:$0xff]
    %v1257 = vld [vmem:[%s1227 + $0xe8] sm:$0xff]
    %v1258 = vld [vmem:[%s1227 + $0xf0] sm:$0xff]
    %v1259 = vld [vmem:[%s1227 + $0xf8] sm:$0xff]
    %s1260 = scalar_lea.vmem %s5, 2
    %v1261 = vld [vmem:[%s1260] sm:$0x3]
    %v1263 = vlaneseq
    %v1264 = vshrl.u32 %v1263, 7
    %v1265 = vsub.s32 0, %v1264
    %v1266 = vrot.slane %v1261, %v1265
    %v1267 = vlaneseq
    %v1268 = vshrl.u32 %v1267, 7
    %v1269 = vsub.s32 1, %v1268
    %v1270 = vrot.slane %v1261, %v1269
    %v1305 = vunpack.c.l.b16 %v1228
    %v1306 = vunpack.c.h.b16 %v1228
    %v1307 = vunpack.c.l.b16 %v1229
    %v1308 = vunpack.c.h.b16 %v1229
    %v1309 = vunpack.c.l.b16 %v1230
    %v1310 = vunpack.c.h.b16 %v1230
    %v1311 = vunpack.c.l.b16 %v1231
    %v1312 = vunpack.c.h.b16 %v1231
    %v1313 = vunpack.c.l.b16 %v1232
    %v1314 = vunpack.c.h.b16 %v1232
    %v1315 = vunpack.c.l.b16 %v1233
    %v1316 = vunpack.c.h.b16 %v1233
    %v1317 = vunpack.c.l.b16 %v1234
    %v1318 = vunpack.c.h.b16 %v1234
    %v1319 = vunpack.c.l.b16 %v1235
    %v1320 = vunpack.c.h.b16 %v1235
    %v1321 = vunpack.c.l.b16 %v1236
    %v1322 = vunpack.c.h.b16 %v1236
    %v1323 = vunpack.c.l.b16 %v1237
    %v1324 = vunpack.c.h.b16 %v1237
    %v1325 = vunpack.c.l.b16 %v1238
    %v1326 = vunpack.c.h.b16 %v1238
    %v1327 = vunpack.c.l.b16 %v1239
    %v1328 = vunpack.c.h.b16 %v1239
    %v1329 = vunpack.c.l.b16 %v1240
    %v1330 = vunpack.c.h.b16 %v1240
    %v1331 = vunpack.c.l.b16 %v1241
    %v1332 = vunpack.c.h.b16 %v1241
    %v1333 = vunpack.c.l.b16 %v1242
    %v1334 = vunpack.c.h.b16 %v1242
    %v1335 = vunpack.c.l.b16 %v1243
    %v1336 = vunpack.c.h.b16 %v1243
    %v1337 = vunpack.c.l.b16 %v1244
    %v1338 = vunpack.c.h.b16 %v1244
    %v1339 = vunpack.c.l.b16 %v1245
    %v1340 = vunpack.c.h.b16 %v1245
    %v1341 = vunpack.c.l.b16 %v1246
    %v1342 = vunpack.c.h.b16 %v1246
    %v1343 = vunpack.c.l.b16 %v1247
    %v1344 = vunpack.c.h.b16 %v1247
    %v1345 = vunpack.c.l.b16 %v1248
    %v1346 = vunpack.c.h.b16 %v1248
    %v1347 = vunpack.c.l.b16 %v1249
    %v1348 = vunpack.c.h.b16 %v1249
    %v1349 = vunpack.c.l.b16 %v1250
    %v1350 = vunpack.c.h.b16 %v1250
    %v1351 = vunpack.c.l.b16 %v1251
    %v1352 = vunpack.c.h.b16 %v1251
    %v1353 = vunpack.c.l.b16 %v1252
    %v1354 = vunpack.c.h.b16 %v1252
    %v1355 = vunpack.c.l.b16 %v1253
    %v1356 = vunpack.c.h.b16 %v1253
    %v1357 = vunpack.c.l.b16 %v1254
    %v1358 = vunpack.c.h.b16 %v1254
    %v1359 = vunpack.c.l.b16 %v1255
    %v1360 = vunpack.c.h.b16 %v1255
    %v1361 = vunpack.c.l.b16 %v1256
    %v1362 = vunpack.c.h.b16 %v1256
    %v1363 = vunpack.c.l.b16 %v1257
    %v1364 = vunpack.c.h.b16 %v1257
    %v1365 = vunpack.c.l.b16 %v1258
    %v1366 = vunpack.c.h.b16 %v1258
    %v1367 = vunpack.c.l.b16 %v1259
    %v1368 = vunpack.c.h.b16 %v1259
    %v1369 = vpack.c.b16 %v1307, %v1305
    %v1370 = vpack.c.b16 %v1308, %v1306
    %v1371 = vpack.c.b16 %v1311, %v1309
    %v1372 = vpack.c.b16 %v1312, %v1310
    %v1373 = vpack.c.b16 %v1315, %v1313
    %v1374 = vpack.c.b16 %v1316, %v1314
    %v1375 = vpack.c.b16 %v1319, %v1317
    %v1376 = vpack.c.b16 %v1320, %v1318
    %v1377 = vpack.c.b16 %v1323, %v1321
    %v1378 = vpack.c.b16 %v1324, %v1322
    %v1379 = vpack.c.b16 %v1327, %v1325
    %v1380 = vpack.c.b16 %v1328, %v1326
    %v1381 = vpack.c.b16 %v1331, %v1329
    %v1382 = vpack.c.b16 %v1332, %v1330
    %v1383 = vpack.c.b16 %v1335, %v1333
    %v1384 = vpack.c.b16 %v1336, %v1334
    %v1385 = vpack.c.b16 %v1339, %v1337
    %v1386 = vpack.c.b16 %v1340, %v1338
    %v1387 = vpack.c.b16 %v1343, %v1341
    %v1388 = vpack.c.b16 %v1344, %v1342
    %v1389 = vpack.c.b16 %v1347, %v1345
    %v1390 = vpack.c.b16 %v1348, %v1346
    %v1391 = vpack.c.b16 %v1351, %v1349
    %v1392 = vpack.c.b16 %v1352, %v1350
    %v1393 = vpack.c.b16 %v1355, %v1353
    %v1394 = vpack.c.b16 %v1356, %v1354
    %v1395 = vpack.c.b16 %v1359, %v1357
    %v1396 = vpack.c.b16 %v1360, %v1358
    %v1397 = vpack.c.b16 %v1363, %v1361
    %v1398 = vpack.c.b16 %v1364, %v1362
    %v1399 = vpack.c.b16 %v1367, %v1365
    %v1400 = vpack.c.b16 %v1368, %v1366
    %1433 = vmatprep.subr.bf16.mxu0 %v1370
    %1434 = vmatpush1.bf16.msra.mxu0 %v1369
    %1435 = vmatprep.subr.bf16.mxu0 %v1372
    %1436 = vmatpush1.bf16.msra.mxu0 %v1371
    %1437 = vmatprep.subr.bf16.mxu0 %v1374
    %1438 = vmatpush1.bf16.msra.mxu0 %v1373
    %1439 = vmatprep.subr.bf16.mxu0 %v1376
    %1440 = vmatpush1.bf16.msra.mxu0 %v1375
    %1441 = vmatprep.subr.bf16.mxu0 %v1378
    %1442 = vmatpush1.bf16.msra.mxu0 %v1377
    %1443 = vmatprep.subr.bf16.mxu0 %v1380
    %1444 = vmatpush1.bf16.msra.mxu0 %v1379
    %1445 = vmatprep.subr.bf16.mxu0 %v1382
    %1446 = vmatpush1.bf16.msra.mxu0 %v1381
    %1447 = vmatprep.subr.bf16.mxu0 %v1384
    %1448 = vmatpush1.bf16.msra.mxu0 %v1383
    %1449 = vmatprep.subr.bf16.mxu0 %v1386
    %1450 = vmatpush1.bf16.msra.mxu0 %v1385
    %1451 = vmatprep.subr.bf16.mxu0 %v1388
    %1452 = vmatpush1.bf16.msra.mxu0 %v1387
    %1453 = vmatprep.subr.bf16.mxu0 %v1390
    %1454 = vmatpush1.bf16.msra.mxu0 %v1389
    %1455 = vmatprep.subr.bf16.mxu0 %v1392
    %1456 = vmatpush1.bf16.msra.mxu0 %v1391
    %1457 = vmatprep.subr.bf16.mxu0 %v1394
    %1458 = vmatpush1.bf16.msra.mxu0 %v1393
    %1459 = vmatprep.subr.bf16.mxu0 %v1396
    %1460 = vmatpush1.bf16.msra.mxu0 %v1395
    %1461 = vmatprep.subr.bf16.mxu0 %v1398
    %1462 = vmatpush1.bf16.msra.mxu0 %v1397
    %1463 = vmatprep.subr.bf16.mxu0 %v1400
    %1464 = vmatpush1.bf16.msra.mxu0 %v1399
    %1465 = vmatprep.mubr.bf16.mxu0 %v1212
    %1466 = vmatmul.mubr.bf16.gmra.mrb[0].mxu0 %v1211
    %v1467 = vpop.f32.mrb[0].mxu0
    %v1468 = vadd.f32 %v1266, %v1467
    %v1469 = vpop.f32.mrb[0].mxu0
    %v1470 = vadd.f32 %v1270, %v1469
    %v1471 = vpop.f32.mrb[0].mxu0
    %v1472 = vadd.f32 %v1266, %v1471
    %v1473 = vpop.f32.mrb[0].mxu0
    %v1474 = vadd.f32 %v1270, %v1473
    %1475 = vmatprep.mubr.bf16.mxu0 %v1214
    %1476 = vmatmul.mubr.bf16.gmra.mrb[0].mxu0 %v1213
    %v1477 = vpop.f32.mrb[0].mxu0
    %v1478 = vadd.f32 %v1266, %v1477
    %v1479 = vpop.f32.mrb[0].mxu0
    %v1480 = vadd.f32 %v1270, %v1479
    %v1481 = vpop.f32.mrb[0].mxu0
    %v1482 = vadd.f32 %v1266, %v1481
    %v1483 = vpop.f32.mrb[0].mxu0
    %v1484 = vadd.f32 %v1270, %v1483
    %1485 = vmatprep.mubr.bf16.mxu0 %v1216
    %1486 = vmatmul.mubr.bf16.gmra.mrb[0].mxu0 %v1215
    %v1487 = vpop.f32.mrb[0].mxu0
    %v1488 = vadd.f32 %v1266, %v1487
    %v1489 = vpop.f32.mrb[0].mxu0
    %v1490 = vadd.f32 %v1270, %v1489
    %v1491 = vpop.f32.mrb[0].mxu0
    %v1492 = vadd.f32 %v1266, %v1491
    %v1493 = vpop.f32.mrb[0].mxu0
    %v1494 = vadd.f32 %v1270, %v1493
    %1495 = vmatprep.mubr.bf16.mxu0 %v1218
    %1496 = vmatmul.mubr.bf16.gmra.mrb[0].mxu0 %v1217
    %v1497 = vpop.f32.mrb[0].mxu0
    %v1498 = vadd.f32 %v1266, %v1497
    %v1499 = vpop.f32.mrb[0].mxu0
    %v1500 = vadd.f32 %v1270, %v1499
    %v1501 = vpop.f32.mrb[0].mxu0
    %v1502 = vadd.f32 %v1266, %v1501
    %v1503 = vpop.f32.mrb[0].mxu0
    %v1504 = vadd.f32 %v1270, %v1503
    %1505 = vmatprep.mubr.bf16.mxu0 %v1220
    %1506 = vmatmul.mubr.bf16.gmra.mrb[0].mxu0 %v1219
    %v1507 = vpop.f32.mrb[0].mxu0
    %v1508 = vadd.f32 %v1266, %v1507
    %v1509 = vpop.f32.mrb[0].mxu0
    %v1510 = vadd.f32 %v1270, %v1509
    %v1511 = vpop.f32.mrb[0].mxu0
    %v1512 = vadd.f32 %v1266, %v1511
    %v1513 = vpop.f32.mrb[0].mxu0
    %v1514 = vadd.f32 %v1270, %v1513
    %1515 = vmatprep.mubr.bf16.mxu0 %v1222
    %1516 = vmatmul.mubr.bf16.gmra.mrb[0].mxu0 %v1221
    %v1517 = vpop.f32.mrb[0].mxu0
    %v1518 = vadd.f32 %v1266, %v1517
    %v1519 = vpop.f32.mrb[0].mxu0
    %v1520 = vadd.f32 %v1270, %v1519
    %v1521 = vpop.f32.mrb[0].mxu0
    %v1522 = vadd.f32 %v1266, %v1521
    %v1523 = vpop.f32.mrb[0].mxu0
    %v1524 = vadd.f32 %v1270, %v1523
    %1525 = vmatprep.mubr.bf16.mxu0 %v1224
    %1526 = vmatmul.mubr.bf16.gmra.mrb[0].mxu0 %v1223
    %v1527 = vpop.f32.mrb[0].mxu0
    %v1528 = vadd.f32 %v1266, %v1527
    %v1529 = vpop.f32.mrb[0].mxu0
    %v1530 = vadd.f32 %v1270, %v1529
    %v1531 = vpop.f32.mrb[0].mxu0
    %v1532 = vadd.f32 %v1266, %v1531
    %v1533 = vpop.f32.mrb[0].mxu0
    %v1534 = vadd.f32 %v1270, %v1533
    %1535 = vmatprep.mubr.bf16.mxu0 %v1226
    %1536 = vmatmul.mubr.bf16.gmra.mrb[0].mxu0 %v1225
    %v1537 = vpop.f32.mrb[0].mxu0
    %v1538 = vadd.f32 %v1266, %v1537
    %v1539 = vpop.f32.mrb[0].mxu0
    %v1540 = vadd.f32 %v1270, %v1539
    %v1541 = vpop.f32.mrb[0].mxu0
    %v1542 = vadd.f32 %v1266, %v1541
    %v1543 = vpop.f32.mrb[0].mxu0
    %v1544 = vadd.f32 %v1270, %v1543
    %1545 = vdwg.mxu0
    %v1546 = vmax.f32 %v1468, 0.0
    %v1547 = vmax.f32 %v1470, 0.0
    %v1548 = vmax.f32 %v1472, 0.0
    %v1549 = vmax.f32 %v1474, 0.0
    %v1550 = vmax.f32 %v1478, 0.0
    %v1551 = vmax.f32 %v1480, 0.0
    %v1552 = vmax.f32 %v1482, 0.0
    %v1553 = vmax.f32 %v1484, 0.0
    %v1554 = vmax.f32 %v1488, 0.0
    %v1555 = vmax.f32 %v1490, 0.0
    %v1556 = vmax.f32 %v1492, 0.0
    %v1557 = vmax.f32 %v1494, 0.0
    %v1558 = vmax.f32 %v1498, 0.0
    %v1559 = vmax.f32 %v1500, 0.0
    %v1560 = vmax.f32 %v1502, 0.0
    %v1561 = vmax.f32 %v1504, 0.0
    %v1562 = vmax.f32 %v1508, 0.0
    %v1563 = vmax.f32 %v1510, 0.0
    %v1564 = vmax.f32 %v1512, 0.0
    %v1565 = vmax.f32 %v1514, 0.0
    %v1566 = vmax.f32 %v1518, 0.0
    %v1567 = vmax.f32 %v1520, 0.0
    %v1568 = vmax.f32 %v1522, 0.0
    %v1569 = vmax.f32 %v1524, 0.0
    %v1570 = vmax.f32 %v1528, 0.0
    %v1571 = vmax.f32 %v1530, 0.0
    %v1572 = vmax.f32 %v1532, 0.0
    %v1573 = vmax.f32 %v1534, 0.0
    %v1574 = vmax.f32 %v1538, 0.0
    %v1575 = vmax.f32 %v1540, 0.0
    %v1576 = vmax.f32 %v1542, 0.0
    %v1577 = vmax.f32 %v1544, 0.0
    %s1578 = scalar_lea.vmem %s6, 2
    %v1579 = vld [vmem:[%s1578] sm:$0x3]
    %v1581 = vlaneseq
    %v1582 = vshrl.u32 %v1581, 7
    %v1583 = vsub.s32 0, %v1582
    %v1584 = vrot.slane %v1579, %v1583
    %v1585 = vlaneseq
    %v1586 = vshrl.u32 %v1585, 7
    %v1587 = vsub.s32 1, %v1586
    %v1588 = vrot.slane %v1579, %v1587
    %v1591 = vmul.f32 %v1546, %v1584
    %v1592 = vmul.f32 %v1547, %v1588
    %v1593 = vmul.f32 %v1548, %v1584
    %v1594 = vmul.f32 %v1549, %v1588
    %v1595 = vmul.f32 %v1550, %v1584
    %v1596 = vmul.f32 %v1551, %v1588
    %v1597 = vmul.f32 %v1552, %v1584
    %v1598 = vmul.f32 %v1553, %v1588
    %v1599 = vmul.f32 %v1554, %v1584
    %v1600 = vmul.f32 %v1555, %v1588
    %v1601 = vmul.f32 %v1556, %v1584
    %v1602 = vmul.f32 %v1557, %v1588
    %v1603 = vmul.f32 %v1558, %v1584
    %v1604 = vmul.f32 %v1559, %v1588
    %v1605 = vmul.f32 %v1560, %v1584
    %v1606 = vmul.f32 %v1561, %v1588
    %v1607 = vmul.f32 %v1562, %v1584
    %v1608 = vmul.f32 %v1563, %v1588
    %v1609 = vmul.f32 %v1564, %v1584
    %v1610 = vmul.f32 %v1565, %v1588
    %v1611 = vmul.f32 %v1566, %v1584
    %v1612 = vmul.f32 %v1567, %v1588
    %v1613 = vmul.f32 %v1568, %v1584
    %v1614 = vmul.f32 %v1569, %v1588
    %v1615 = vmul.f32 %v1570, %v1584
    %v1616 = vmul.f32 %v1571, %v1588
    %v1617 = vmul.f32 %v1572, %v1584
    %v1618 = vmul.f32 %v1573, %v1588
    %v1619 = vmul.f32 %v1574, %v1584
    %v1620 = vmul.f32 %v1575, %v1588
    %v1621 = vmul.f32 %v1576, %v1584
    %v1622 = vmul.f32 %v1577, %v1588
    %v1623 = vadd.f32 %v1591, %v1592
    %1624 = vadd.xlane.f32.xlu0 %v1623
    %v1625 = vpop.xlane.xlu0 %1624
    %v1626 = vadd.f32 %v1593, %v1594
    %1627 = vadd.xlane.f32.xlu0 %v1626
    %v1628 = vpop.xlane.xlu0 %1627
    %v1629 = vadd.f32 %v1595, %v1596
    %1630 = vadd.xlane.f32.xlu0 %v1629
    %v1631 = vpop.xlane.xlu0 %1630
    %v1632 = vadd.f32 %v1597, %v1598
    %1633 = vadd.xlane.f32.xlu0 %v1632
    %v1634 = vpop.xlane.xlu0 %1633
    %v1635 = vadd.f32 %v1599, %v1600
    %1636 = vadd.xlane.f32.xlu0 %v1635
    %v1637 = vpop.xlane.xlu0 %1636
    %v1638 = vadd.f32 %v1601, %v1602
    %1639 = vadd.xlane.f32.xlu0 %v1638
    %v1640 = vpop.xlane.xlu0 %1639
    %v1641 = vadd.f32 %v1603, %v1604
    %1642 = vadd.xlane.f32.xlu0 %v1641
    %v1643 = vpop.xlane.xlu0 %1642
    %v1644 = vadd.f32 %v1605, %v1606
    %1645 = vadd.xlane.f32.xlu0 %v1644
    %v1646 = vpop.xlane.xlu0 %1645
    %v1647 = vadd.f32 %v1607, %v1608
    %1648 = vadd.xlane.f32.xlu0 %v1647
    %v1649 = vpop.xlane.xlu0 %1648
    %v1650 = vadd.f32 %v1609, %v1610
    %1651 = vadd.xlane.f32.xlu0 %v1650
    %v1652 = vpop.xlane.xlu0 %1651
    %v1653 = vadd.f32 %v1611, %v1612
    %1654 = vadd.xlane.f32.xlu0 %v1653
    %v1655 = vpop.xlane.xlu0 %1654
    %v1656 = vadd.f32 %v1613, %v1614
    %1657 = vadd.xlane.f32.xlu0 %v1656
    %v1658 = vpop.xlane.xlu0 %1657
    %v1659 = vadd.f32 %v1615, %v1616
    %1660 = vadd.xlane.f32.xlu0 %v1659
    %v1661 = vpop.xlane.xlu0 %1660
    %v1662 = vadd.f32 %v1617, %v1618
    %1663 = vadd.xlane.f32.xlu0 %v1662
    %v1664 = vpop.xlane.xlu0 %1663
    %v1665 = vadd.f32 %v1619, %v1620
    %1666 = vadd.xlane.f32.xlu0 %v1665
    %v1667 = vpop.xlane.xlu0 %1666
    %v1668 = vadd.f32 %v1621, %v1622
    %1669 = vadd.xlane.f32.xlu0 %v1668
    %v1670 = vpop.xlane.xlu0 %1669
    %v1671 = vld [vmem:[%s7 + $0x1] sm:$0x1]
    %1673 = vset.pattern.permute.xlu0 0
    %1674 = vperm.xlu0 %1673, %v1671
    %v1675 = vpop.permute.xlu0 %1674
    %v1676 = vlaneseq
    %v1677 = vshrl.u32 %v1676, 7
    %v1678 = vsub.s32 0, %v1677
    %v1679 = vrot.slane %v1675, %v1678
    %v1681 = vadd.f32 %v1625, %v1679
    %v1682 = vadd.f32 %v1628, %v1679
    %v1683 = vadd.f32 %v1631, %v1679
    %v1684 = vadd.f32 %v1634, %v1679
    %v1685 = vadd.f32 %v1637, %v1679
    %v1686 = vadd.f32 %v1640, %v1679
    %v1687 = vadd.f32 %v1643, %v1679
    %v1688 = vadd.f32 %v1646, %v1679
    %v1689 = vadd.f32 %v1649, %v1679
    %v1690 = vadd.f32 %v1652, %v1679
    %v1691 = vadd.f32 %v1655, %v1679
    %v1692 = vadd.f32 %v1658, %v1679
    %v1693 = vadd.f32 %v1661, %v1679
    %v1694 = vadd.f32 %v1664, %v1679
    %v1695 = vadd.f32 %v1667, %v1679
    %v1696 = vadd.f32 %v1670, %v1679
    %1713 = vset.pattern.permute.xlu0 0
    %1714 = vperm.xlu0 %1713, %v1681
    %v1715 = vpop.permute.xlu0 %1714
    %1716 = vset.pattern.permute.xlu0 0
    %1717 = vperm.xlu0 %1716, %v1682
    %v1718 = vpop.permute.xlu0 %1717
    %1719 = vset.pattern.permute.xlu0 0
    %1720 = vperm.xlu0 %1719, %v1683
    %v1721 = vpop.permute.xlu0 %1720
    %1722 = vset.pattern.permute.xlu0 0
    %1723 = vperm.xlu0 %1722, %v1684
    %v1724 = vpop.permute.xlu0 %1723
    %1725 = vset.pattern.permute.xlu0 0
    %1726 = vperm.xlu0 %1725, %v1685
    %v1727 = vpop.permute.xlu0 %1726
    %1728 = vset.pattern.permute.xlu0 0
    %1729 = vperm.xlu0 %1728, %v1686
    %v1730 = vpop.permute.xlu0 %1729
    %1731 = vset.pattern.permute.xlu0 0
    %1732 = vperm.xlu0 %1731, %v1687
    %v1733 = vpop.permute.xlu0 %1732
    %1734 = vset.pattern.permute.xlu0 0
    %1735 = vperm.xlu0 %1734, %v1688
    %v1736 = vpop.permute.xlu0 %1735
    %1737 = vset.pattern.permute.xlu0 0
    %1738 = vperm.xlu0 %1737, %v1689
    %v1739 = vpop.permute.xlu0 %1738
    %1740 = vset.pattern.permute.xlu0 0
    %1741 = vperm.xlu0 %1740, %v1690
    %v1742 = vpop.permute.xlu0 %1741
    %1743 = vset.pattern.permute.xlu0 0
    %1744 = vperm.xlu0 %1743, %v1691
    %v1745 = vpop.permute.xlu0 %1744
    %1746 = vset.pattern.permute.xlu0 0
    %1747 = vperm.xlu0 %1746, %v1692
    %v1748 = vpop.permute.xlu0 %1747
    %1749 = vset.pattern.permute.xlu0 0
    %1750 = vperm.xlu0 %1749, %v1693
    %v1751 = vpop.permute.xlu0 %1750
    %1752 = vset.pattern.permute.xlu0 0
    %1753 = vperm.xlu0 %1752, %v1694
    %v1754 = vpop.permute.xlu0 %1753
    %1755 = vset.pattern.permute.xlu0 0
    %1756 = vperm.xlu0 %1755, %v1695
    %v1757 = vpop.permute.xlu0 %1756
    %1758 = vset.pattern.permute.xlu0 0
    %1759 = vperm.xlu0 %1758, %v1696
    %v1760 = vpop.permute.xlu0 %1759
    %v1761 = vlaneseq
    %v1762 = vshrl.u32 %v1761, 7
    %v1763 = vsub.s32 %v1099, %v1762
    %v1764 = vrot.slane %v1715, %v1763
    %v1765 = vlaneseq
    %v1766 = vshrl.u32 %v1765, 7
    %v1767 = vsub.s32 %v1104, %v1766
    %v1768 = vrot.slane %v1718, %v1767
    %v1769 = vsel %vm1109, %v1768, %v1764
    %v1770 = vlaneseq
    %v1771 = vshrl.u32 %v1770, 7
    %v1772 = vsub.s32 %v1111, %v1771
    %v1773 = vrot.slane %v1721, %v1772
    %v1774 = vsel %vm1116, %v1773, %v1769
    %v1775 = vlaneseq
    %v1776 = vshrl.u32 %v1775, 7
    %v1777 = vsub.s32 %v1118, %v1776
    %v1778 = vrot.slane %v1724, %v1777
    %v1779 = vsel %vm1123, %v1778, %v1774
    %v1780 = vlaneseq
    %v1781 = vshrl.u32 %v1780, 7
    %v1782 = vsub.s32 %v1125, %v1781
    %v1783 = vrot.slane %v1727, %v1782
    %v1784 = vsel %vm1130, %v1783, %v1779
    %v1785 = vlaneseq
    %v1786 = vshrl.u32 %v1785, 7
    %v1787 = vsub.s32 %v1132, %v1786
    %v1788 = vrot.slane %v1730, %v1787
    %v1789 = vsel %vm1137, %v1788, %v1784
    %v1790 = vlaneseq
    %v1791 = vshrl.u32 %v1790, 7
    %v1792 = vsub.s32 %v1139, %v1791
    %v1793 = vrot.slane %v1733, %v1792
    %v1794 = vsel %vm1144, %v1793, %v1789
    %v1795 = vlaneseq
    %v1796 = vshrl.u32 %v1795, 7
    %v1797 = vsub.s32 %v1146, %v1796
    %v1798 = vrot.slane %v1736, %v1797
    %v1799 = vsel %vm1151, %v1798, %v1794
    %v1800 = vlaneseq
    %v1801 = vshrl.u32 %v1800, 7
    %v1802 = vsub.s32 %v1153, %v1801
    %v1803 = vrot.slane %v1739, %v1802
    %v1804 = vsel %vm1158, %v1803, %v1799
    %v1805 = vlaneseq
    %v1806 = vshrl.u32 %v1805, 7
    %v1807 = vsub.s32 %v1160, %v1806
    %v1808 = vrot.slane %v1742, %v1807
    %v1809 = vsel %vm1165, %v1808, %v1804
    %v1810 = vlaneseq
    %v1811 = vshrl.u32 %v1810, 7
    %v1812 = vsub.s32 %v1167, %v1811
    %v1813 = vrot.slane %v1745, %v1812
    %v1814 = vsel %vm1172, %v1813, %v1809
    %v1815 = vlaneseq
    %v1816 = vshrl.u32 %v1815, 7
    %v1817 = vsub.s32 %v1174, %v1816
    %v1818 = vrot.slane %v1748, %v1817
    %v1819 = vsel %vm1179, %v1818, %v1814
    %v1820 = vlaneseq
    %v1821 = vshrl.u32 %v1820, 7
    %v1822 = vsub.s32 %v1181, %v1821
    %v1823 = vrot.slane %v1751, %v1822
    %v1824 = vsel %vm1186, %v1823, %v1819
    %v1825 = vlaneseq
    %v1826 = vshrl.u32 %v1825, 7
    %v1827 = vsub.s32 %v1188, %v1826
    %v1828 = vrot.slane %v1754, %v1827
    %v1829 = vsel %vm1193, %v1828, %v1824
    %v1830 = vlaneseq
    %v1831 = vshrl.u32 %v1830, 7
    %v1832 = vsub.s32 %v1195, %v1831
    %v1833 = vrot.slane %v1757, %v1832
    %v1834 = vsel %vm1200, %v1833, %v1829
    %v1835 = vlaneseq
    %v1836 = vshrl.u32 %v1835, 7
    %v1837 = vsub.s32 %v1202, %v1836
    %v1838 = vrot.slane %v1760, %v1837
    %v1839 = vsel %vm1207, %v1838, %v1834
    %1841 = vst [vmem:[%s8 + $0x1] sm:$0x1] %v1839
    // Predicated region
    $region38: #{critic_forward.1} parent=1 // pred_check
      _
    $region39: #{critic_forward.1} parent=1 // pred_check_branch
      %1843 = sbr.rel (0) target = $region41
    $region40: #{critic_forward.1} parent=1 // pred_region
      _
    $region41: #{critic_forward.1} parent=1 // pred_fallthru
      _
    // Predicated region
    $region42: #{critic_forward.1} parent=1 // pred_check
      _
    $region43: #{critic_forward.1} parent=1 // pred_check_branch
      %1845 = sbr.rel (0) target = $region45
    $region44: #{critic_forward.1} parent=1 // pred_region
      _
    $region45: #{critic_forward.1} parent=1 // pred_fallthru
      _
    %1846 = vsyncpa [#allocation3], 1

</llo_original>
